<compile_context>
chip_gen: v7x
topology: tpu7x:2x2x1
jax: 0.10.0
libtpu: 0.0.40
codegen_flags: <defaults>
</compile_context>

<pallas_src>
import functools

import numpy as np

import jax
import jax.numpy as jnp
from jax import lax
from jax.experimental import pallas as pl
from jax.experimental.pallas import tpu as pltpu


# ---------------------------------------------------------------------------
# VMEM budget: per-generation limit derived from the chip (review item #5/#6)
# ---------------------------------------------------------------------------
@functools.lru_cache(maxsize=None)
def _vmem_limit_bytes():
    cap = None
    try:
        info = pltpu.get_tpu_info()
        cap = getattr(info, "vmem_capacity_bytes", None)
    except Exception:
        cap = None
    if not cap:
        cap = 128 * 1024 * 1024
    # v5e/v6e (128 MiB physical) -> 100 MiB; v7x (64 MiB physical) -> ~44 MiB.
    return int(min(100 * 1024 * 1024, cap * 7 // 10))


def _pick_row_tile(r_out, cout, budget_bytes=96 * 1024):
    """Largest divisor of r_out whose f32 accumulator fits in ~vregs."""
    target = max(1, budget_bytes // (4 * max(cout, 1)))
    target = min(target, r_out, 512)
    best = 1
    for d in range(1, r_out + 1):
        if r_out % d == 0 and d <= target:
            best = d
    return best


# ---------------------------------------------------------------------------
# Pallas kernels
# ---------------------------------------------------------------------------
def _conv_k4s2p1_kernel(x_ref, w_ref, o_ref, *, Wo, R_out, tR, leaky_slope):
    """Fused 4x4 / stride-2 / pad-1 conv + LeakyReLU for one batch element.

    x_ref : (1, Hq*Wo, 8*C)  width-im2col'ed input with BOTH h-phases folded
                             into the contraction axis (Hq = Ho + 1).
    w_ref : (2, 8*C, Cout)   weights indexed by output-row shift dh.
    o_ref : (1, Ho*Wo, Cout)

    out[oh*Wo + ow, :] = sum_{dh in {0,1}} x[(oh+dh)*Wo + ow, :] @ w[dh]
    i.e. 2 row-shifted MXU matmuls with K = 8*C, accumulated in f32.
    The flat output rows are tiled (tR) so the f32 accumulator stays small
    (vreg-resident); LeakyReLU + store are fused per tile.
    """
    def tile(r0):
        x0 = x_ref[0, pl.ds(r0, tR), :]          # dh = 0 taps
        x1 = x_ref[0, pl.ds(r0 + Wo, tR), :]     # dh = 1 taps (shift by 1 row)
        acc = jnp.dot(x0, w_ref[0, :, :], preferred_element_type=jnp.float32)
        acc = acc + jnp.dot(x1, w_ref[1, :, :],
                            preferred_element_type=jnp.float32)
        acc = jnp.where(acc >= 0, acc, leaky_slope * acc)   # fused LeakyReLU
        o_ref[0, pl.ds(r0, tR), :] = acc.astype(o_ref.dtype)

    n_tiles = R_out // tR
    if n_tiles <= 8:
        # Short, fixed trip-count: static slices (fully unrolled).
        for t in range(n_tiles):
            tile(t * tR)
    else:
        def body(t, carry):
            tile(pl.multiple_of(t * tR, tR))
            return carry
        lax.fori_loop(0, n_tiles, body, 0)


def _fc_kernel(x_ref, w_ref, o_ref):
    """Single-shot heads matmul: o = x @ w (f32 accumulation on the MXU)."""
    o_ref[...] = jnp.dot(x_ref[...], w_ref[...],
                         preferred_element_type=jnp.float32).astype(o_ref.dtype)


# ---------------------------------------------------------------------------
# Layer wrappers
# ---------------------------------------------------------------------------
def conv4s2p1_lrelu(x_nhwc, w_oihw, leaky_slope=0.2):
    """Conv2d(k=4, s=2, p=1, bias=False) + LeakyReLU(0.2). NHWC in / NHWC out."""
    B, H, W, C = x_nhwc.shape
    Cout = w_oihw.shape[0]
    # TODO(synk): odd intermediate H/W (non power-of-2 image/bbox sizes) would
    # need PyTorch's floor((H-2)/2)+1 handling; this GAN only uses even sizes.
    assert H % 2 == 0 and W % 2 == 0, "even spatial dims required"
    Ho, Wo = H // 2, W // 2
    Hq = Ho + 1
    K8 = 8 * C
    R_out = Ho * Wo
    dt = x_nhwc.dtype

    # ---- glue: width-only im2col + phase fold into channels (~2x bytes) ----
    xp = jnp.pad(x_nhwc, ((0, 0), (1, 1), (1, 1), (0, 0)))       # (B,H+2,W+2,C)
    # wc[b, h, ow, kw*C + ci] = xp[b, h, 2*ow + kw, ci]
    wc = jnp.concatenate(
        [xp[:, :, kw:kw + 2 * Wo - 1:2, :] for kw in range(4)],
        axis=-1)                                                 # (B,H+2,Wo,4C)
    # padded row h = 2*hq + ph  ->  fold phase ph into the contraction axis:
    # pcf[b, hq*Wo + ow, ph*4C + k] = wc[b, 2*hq + ph, ow, k]
    pcf = (wc.reshape(B, Hq, 2, Wo, 4 * C)
             .transpose(0, 1, 3, 2, 4)
             .reshape(B, Hq * Wo, K8))                           # (B,Hq*Wo,8C)

    # weights (Cout, C, kh, kw) -> (dh, ph*4C + kw*C + ci, Cout), kh = 2*dh+ph
    wq = (w_oihw.astype(dt)
                .transpose(2, 3, 1, 0)       # (kh, kw, ci, co)
                .reshape(2, K8, Cout))       # (dh, ph*4C + kw*C + ci, co)

    tR = _pick_row_tile(R_out, Cout)
    kernel = functools.partial(_conv_k4s2p1_kernel, Wo=Wo, R_out=R_out, tR=tR,
                               leaky_slope=leaky_slope)
    y = pl.pallas_call(
        kernel,
        out_shape=jax.ShapeDtypeStruct((B, R_out, Cout), dt),
        grid=(B,),
        in_specs=[
            pl.BlockSpec((1, Hq * Wo, K8), lambda b: (b, 0, 0)),
            # Constant index_map: the weight block is fetched once and not
            # re-DMA'd across the batch grid steps.
            pl.BlockSpec((2, K8, Cout), lambda b: (0, 0, 0)),
        ],
        out_specs=pl.BlockSpec((1, R_out, Cout), lambda b: (b, 0, 0)),
        compiler_params=pltpu.CompilerParams(
            dimension_semantics=("parallel",),
            vmem_limit_bytes=_vmem_limit_bytes()),
    )(pcf, wq)
    return y.reshape(B, Ho, Wo, Cout)


def fc_matmul(x, w):
    """Heads matmul x @ w -- single grid step, no scratch (review item #10)."""
    M, K = x.shape
    K2, N = w.shape
    assert K == K2
    return pl.pallas_call(
        _fc_kernel,
        out_shape=jax.ShapeDtypeStruct((M, N), jnp.float32),
        grid=(1,),
        in_specs=[pl.BlockSpec((M, K), lambda i: (0, 0)),
                  pl.BlockSpec((K, N), lambda i: (0, 0))],
        out_specs=pl.BlockSpec((M, N), lambda i: (0, 0)),
        compiler_params=pltpu.CompilerParams(
            dimension_semantics=("arbitrary",),
            vmem_limit_bytes=_vmem_limit_bytes()),
    )(x, w)


# ---------------------------------------------------------------------------
# Parameter initialisation (deterministic, synthetic — matches module shapes)
# ---------------------------------------------------------------------------
def init_params(key, *, nc, conv_dim, repeat_g, repeat_l, max_filt,
                image_size, bbox_size, c_dim):
    def conv_chain(key, repeat):
        ws = []
        cin, cout = nc, conv_dim
        for _ in range(repeat):
            key, kw = jax.random.split(key)
            ws.append(jax.random.normal(kw, (cout, cin, 4, 4), jnp.float32) * 0.1)
            cin, cout = cout, min(cout * 2, max_filt)
        return key, ws, cin

    key, g_ws, cg = conv_chain(key, repeat_g)
    key, l_ws, cl = conv_chain(key, repeat_l)
    kg = image_size // (2 ** repeat_g)
    kl = bbox_size // (2 ** repeat_l)
    fc1_in = cg * kg * kg + cl * kl * kl
    fc2_in = cl * kl * kl

    key, k1, k2 = jax.random.split(key, 3)
    fc1_w = jax.random.normal(k1, (1, fc1_in), jnp.float32) * 0.05
    fc2_w = jax.random.normal(k2, (c_dim, fc2_in), jnp.float32) * 0.05
    return {"global_convs": g_ws, "local_convs": l_ws,
            "fc1_w": fc1_w, "fc2_w": fc2_w}


# ---------------------------------------------------------------------------
# Forward pass (Pallas)
# ---------------------------------------------------------------------------
@functools.partial(jax.jit, static_argnames=("classify", "compute_dtype"))
def discriminator_forward(params, x_nchw, box_nchw, classify=False,
                          compute_dtype=jnp.bfloat16):
    bsz = x_nchw.shape[0]
    cd = compute_dtype

    # Single layout change at the input: NCHW -> NHWC (channels on lanes).
    h = jnp.transpose(x_nchw, (0, 2, 3, 1)).astype(cd)
    for w in params["global_convs"]:
        h = conv4s2p1_lrelu(h, w)
    h_global = h                                              # (B, kg, kg, Cg)

    h = jnp.transpose(box_nchw, (0, 2, 3, 1)).astype(cd)
    for w in params["local_convs"]:
        h = conv4s2p1_lrelu(h, w)
    h_local = h                                               # (B, kl, kl, Cl)

    # Flatten in NCHW order so the feature vector matches PyTorch's .view().
    hg_flat = jnp.transpose(h_global, (0, 3, 1, 2)).reshape(bsz, -1)
    hl_flat = jnp.transpose(h_local, (0, 3, 1, 2)).reshape(bsz, -1)
    h_append = jnp.concatenate([hg_flat, hl_flat], axis=-1)   # (B, D1)

    fc1_wT = params["fc1_w"].T.astype(cd)                     # (D1, 1)
    if classify:
        # Fuse fc1 + fc2 into one matmul: fc2 only sees the local features,
        # so its weight is zero-padded over the global columns of h_append.
        c_dim = params["fc2_w"].shape[0]
        d_global = hg_flat.shape[1]
        w_cls = jnp.concatenate(
            [jnp.zeros((d_global, c_dim), cd), params["fc2_w"].T.astype(cd)],
            axis=0)                                           # (D1, c_dim)
        w_heads = jnp.concatenate([fc1_wT, w_cls], axis=1)    # (D1, 1 + c_dim)
        heads = fc_matmul(h_append, w_heads)                  # (B, 1 + c_dim)
        out_rf = jnp.squeeze(heads[:, 0:1])
        out_cls = heads[:, 1:]
    else:
        out_rf = jnp.squeeze(fc_matmul(h_append, fc1_wT))
        out_cls = None

    return out_rf, out_cls, h_append


# ---------------------------------------------------------------------------
# Pure-JAX reference (XLA conv, HIGHEST precision) for the sanity check
# ---------------------------------------------------------------------------
def ref_forward(params, x, box_img, classify=False):
    hi = jax.lax.Precision.HIGHEST

    def conv(h, w):
        y = jax.lax.conv_general_dilated(
            h, w, window_strides=(2, 2), padding=((1, 1), (1, 1)),
            dimension_numbers=("NCHW", "OIHW", "NCHW"), precision=hi)
        return jnp.where(y >= 0, y, 0.2 * y)

    bsz = x.shape[0]
    h = x
    for w in params["global_convs"]:
        h = conv(h, w)
    h_global = h
    h = box_img
    for w in params["local_convs"]:
        h = conv(h, w)
    h_local = h
    h_append = jnp.concatenate(
        [h_global.reshape(bsz, -1), h_local.reshape(bsz, -1)], axis=-1)
    out_rf = jnp.squeeze(jnp.dot(h_append, params["fc1_w"].T, precision=hi))
    out_cls = None
    if classify:
        out_cls = jnp.dot(h_local.reshape(bsz, -1), params["fc2_w"].T,
                          precision=hi)
    return out_rf, out_cls, h_append


def _f32(a):
    return np.asarray(jnp.asarray(a, jnp.float32))


# ---------------------------------------------------------------------------
if __name__ == "__main__":
    # Small config consistent with the module's constructor logic:
    IMAGE_SIZE, BBOX_SIZE = 16, 8
    CONV_DIM, C_DIM, NC = 8, 5, 3
    REPEAT_G, REPEAT_L = 2, 2
    MAX_FILT = 512 if IMAGE_SIZE == 128 else 128
    BATCH = 2

    key = jax.random.PRNGKey(0)
    key, kp, kx, kb = jax.random.split(key, 4)

    params = init_params(
        kp, nc=NC, conv_dim=CONV_DIM, repeat_g=REPEAT_G, repeat_l=REPEAT_L,
        max_filt=MAX_FILT, image_size=IMAGE_SIZE, bbox_size=BBOX_SIZE,
        c_dim=C_DIM)

    x = jax.random.normal(kx, (BATCH, NC, IMAGE_SIZE, IMAGE_SIZE), jnp.float32)
    box_img = jax.random.normal(kb, (BATCH, NC, BBOX_SIZE, BBOX_SIZE),
                                jnp.float32)

    r_rf, r_cls, r_app = ref_forward(params, x, box_img, classify=True)

    # --- f32 path: verifies the kernel math tightly ------------------------
    f_rf, f_cls, f_app = discriminator_forward(
        params, x, box_img, classify=True, compute_dtype=jnp.float32)
    jax.block_until_ready(f_rf)
    jax.block_until_ready(f_cls)
    jax.block_until_ready(f_app)
    np.testing.assert_allclose(_f32(f_rf), _f32(r_rf), rtol=1e-4, atol=1e-4)
    np.testing.assert_allclose(_f32(f_cls), _f32(r_cls), rtol=1e-4, atol=1e-4)
    np.testing.assert_allclose(_f32(f_app), _f32(r_app), rtol=1e-4, atol=1e-4)

    # --- bf16 performance path (default): loosened tolerance ---------------
    out_rf, out_cls, h_append = discriminator_forward(params, x, box_img,
                                                      classify=True)
    jax.block_until_ready(out_rf)
    jax.block_until_ready(out_cls)
    jax.block_until_ready(h_append)
    np.testing.assert_allclose(_f32(out_rf), _f32(r_rf), rtol=5e-2, atol=5e-2)
    np.testing.assert_allclose(_f32(out_cls), _f32(r_cls), rtol=5e-2, atol=5e-2)
    np.testing.assert_allclose(_f32(h_append), _f32(r_app), rtol=5e-2, atol=5e-2)

    curr_dim = min(CONV_DIM * 2, MAX_FILT)          # 16 after two conv layers
    kg, kl = IMAGE_SIZE // (2 ** REPEAT_G), BBOX_SIZE // (2 ** REPEAT_L)
    assert out_rf.shape == (BATCH,)
    assert out_cls.shape == (BATCH, C_DIM)
    assert h_append.shape == (BATCH, curr_dim * (kg * kg + kl * kl))

    print("KERNEL_OK")
</pallas_src>

<mosaic_0001>
module attributes {stable_mosaic.version = 11 : i64} {
  func.func @_conv_k4s2p1_kernel(%arg0: i32, %arg1: memref<1x72x24xf32, #tpu.memory_space<vmem>>, %arg2: memref<2x24x8xf32, #tpu.memory_space<vmem>>, %arg3: memref<1x64x8xf32, #tpu.memory_space<vmem>>) attributes {dimension_semantics = [#tpu.dimension_semantics<parallel>], iteration_bounds = array<i64: 2>, scalar_prefetch = 0 : i64, scratch_operands = 0 : i64, tpu.core_type = #tpu.core_type<tc>, window_params = [{transform_indices = @transform_0, window_bounds = array<i64: 1, 72, 24>}, {pipeline_mode = #tpu.pipeline_mode<synchronous>, transform_indices = @transform_1, window_bounds = array<i64: 2, 24, 8>}, {transform_indices = @transform_2, window_bounds = array<i64: 1, 64, 8>}]} {
    %c0 = arith.constant 0 : index
    %c0_0 = arith.constant 0 : index
    %c0_1 = arith.constant 0 : index
    %0 = vector.load %arg1[%c0, %c0_0, %c0_1] : memref<1x72x24xf32, #tpu.memory_space<vmem>>, vector<1x64x24xf32>
    %1 = vector.shape_cast %0 : vector<1x64x24xf32> to vector<64x24xf32>
    %c0_2 = arith.constant 0 : index
    %c8 = arith.constant 8 : index
    %c0_3 = arith.constant 0 : index
    %2 = vector.load %arg1[%c0_2, %c8, %c0_3] : memref<1x72x24xf32, #tpu.memory_space<vmem>>, vector<1x64x24xf32>
    %3 = vector.shape_cast %2 : vector<1x64x24xf32> to vector<64x24xf32>
    %c0_4 = arith.constant 0 : index
    %c0_5 = arith.constant 0 : index
    %c0_6 = arith.constant 0 : index
    %4 = vector.load %arg2[%c0_4, %c0_5, %c0_6] : memref<2x24x8xf32, #tpu.memory_space<vmem>>, vector<1x24x8xf32>
    %5 = vector.shape_cast %4 : vector<1x24x8xf32> to vector<24x8xf32>
    %cst = arith.constant dense<0.000000e+00> : vector<64x8xf32>
    %6 = tpu.matmul %1, %5, %cst {dimension_numbers = #tpu.dot_dimension_numbers<[1], [0], [0], [1], [0, 0, 1, 1], [], []>} : vector<64x24xf32>, vector<24x8xf32>, vector<64x8xf32> -> vector<64x8xf32>
    %c1 = arith.constant 1 : index
    %c0_7 = arith.constant 0 : index
    %c0_8 = arith.constant 0 : index
    %7 = vector.load %arg2[%c1, %c0_7, %c0_8] : memref<2x24x8xf32, #tpu.memory_space<vmem>>, vector<1x24x8xf32>
    %8 = vector.shape_cast %7 : vector<1x24x8xf32> to vector<24x8xf32>
    %cst_9 = arith.constant dense<0.000000e+00> : vector<64x8xf32>
    %9 = tpu.matmul %3, %8, %cst_9 {dimension_numbers = #tpu.dot_dimension_numbers<[1], [0], [0], [1], [0, 0, 1, 1], [], []>} : vector<64x24xf32>, vector<24x8xf32>, vector<64x8xf32> -> vector<64x8xf32>
    %10 = arith.addf %6, %9 : vector<64x8xf32>
    %cst_10 = arith.constant 0.000000e+00 : f32
    %11 = vector.broadcast %cst_10 : f32 to vector<64x8xf32>
    %12 = arith.cmpf oge, %10, %11 : vector<64x8xf32>
    %cst_11 = arith.constant 2.000000e-01 : f32
    %13 = vector.broadcast %cst_11 : f32 to vector<64x8xf32>
    %14 = arith.mulf %13, %10 : vector<64x8xf32>
    %15 = arith.select %12, %10, %14 : vector<64x8xi1>, vector<64x8xf32>
    %c0_12 = arith.constant 0 : index
    %c0_13 = arith.constant 0 : index
    %c0_14 = arith.constant 0 : index
    %16 = vector.load %arg3[%c0_12, %c0_13, %c0_14] : memref<1x64x8xf32, #tpu.memory_space<vmem>>, vector<1x64x8xf32>
    %17 = vector.shape_cast %16 : vector<1x64x8xf32> to vector<64x8xf32>
    %18 = vector.shape_cast %15 : vector<64x8xf32> to vector<1x64x8xf32>
    tpu.vector_store %arg3[%c0_12, %c0_13, %c0_14], %18 {strides = array<i32>} : memref<1x64x8xf32, #tpu.memory_space<vmem>>, vector<1x64x8xf32>,
    return
  }
  func.func @transform_0(%arg0: i32) -> (i32, i32, i32) {
    %c0_i32 = arith.constant 0 : i32
    %c0_i32_0 = arith.constant 0 : i32
    %c0_i32_1 = arith.constant 0 : i32
    return %arg0, %c0_i32, %c0_i32_0 : i32, i32, i32
  }
  func.func @transform_1(%arg0: i32) -> (i32, i32, i32) {
    %c0_i32 = arith.constant 0 : i32
    %c0_i32_0 = arith.constant 0 : i32
    %c0_i32_1 = arith.constant 0 : i32
    %c0_i32_2 = arith.constant 0 : i32
    return %c0_i32, %c0_i32_0, %c0_i32_1 : i32, i32, i32
  }
  func.func @transform_2(%arg0: i32) -> (i32, i32, i32) {
    %c0_i32 = arith.constant 0 : i32
    %c0_i32_0 = arith.constant 0 : i32
    %c0_i32_1 = arith.constant 0 : i32
    return %arg0, %c0_i32, %c0_i32_0 : i32, i32, i32
  }
}

module attributes {stable_mosaic.version = 11 : i64} {
  func.func @_conv_k4s2p1_kernel(%arg0: i32, %arg1: memref<1x20x64xf32, #tpu.memory_space<vmem>>, %arg2: memref<2x64x16xf32, #tpu.memory_space<vmem>>, %arg3: memref<1x16x16xf32, #tpu.memory_space<vmem>>) attributes {dimension_semantics = [#tpu.dimension_semantics<parallel>], iteration_bounds = array<i64: 2>, scalar_prefetch = 0 : i64, scratch_operands = 0 : i64, tpu.core_type = #tpu.core_type<tc>, window_params = [{transform_indices = @transform_0, window_bounds = array<i64: 1, 20, 64>}, {pipeline_mode = #tpu.pipeline_mode<synchronous>, transform_indices = @transform_1, window_bounds = array<i64: 2, 64, 16>}, {transform_indices = @transform_2, window_bounds = array<i64: 1, 16, 16>}]} {
    %c0 = arith.constant 0 : index
    %c0_0 = arith.constant 0 : index
    %c0_1 = arith.constant 0 : index
    %0 = vector.load %arg1[%c0, %c0_0, %c0_1] : memref<1x20x64xf32, #tpu.memory_space<vmem>>, vector<1x16x64xf32>
    %1 = vector.shape_cast %0 : vector<1x16x64xf32> to vector<16x64xf32>
    %c0_2 = arith.constant 0 : index
    %c4 = arith.constant 4 : index
    %c0_3 = arith.constant 0 : index
    %2 = vector.load %arg1[%c0_2, %c4, %c0_3] : memref<1x20x64xf32, #tpu.memory_space<vmem>>, vector<1x16x64xf32>
    %3 = vector.shape_cast %2 : vector<1x16x64xf32> to vector<16x64xf32>
    %c0_4 = arith.constant 0 : index
    %c0_5 = arith.constant 0 : index
    %c0_6 = arith.constant 0 : index
    %4 = vector.load %arg2[%c0_4, %c0_5, %c0_6] : memref<2x64x16xf32, #tpu.memory_space<vmem>>, vector<1x64x16xf32>
    %5 = vector.shape_cast %4 : vector<1x64x16xf32> to vector<64x16xf32>
    %cst = arith.constant dense<0.000000e+00> : vector<16x16xf32>
    %6 = tpu.matmul %1, %5, %cst {dimension_numbers = #tpu.dot_dimension_numbers<[1], [0], [0], [1], [0, 0, 1, 1], [], []>} : vector<16x64xf32>, vector<64x16xf32>, vector<16x16xf32> -> vector<16x16xf32>
    %c1 = arith.constant 1 : index
    %c0_7 = arith.constant 0 : index
    %c0_8 = arith.constant 0 : index
    %7 = vector.load %arg2[%c1, %c0_7, %c0_8] : memref<2x64x16xf32, #tpu.memory_space<vmem>>, vector<1x64x16xf32>
    %8 = vector.shape_cast %7 : vector<1x64x16xf32> to vector<64x16xf32>
    %cst_9 = arith.constant dense<0.000000e+00> : vector<16x16xf32>
    %9 = tpu.matmul %3, %8, %cst_9 {dimension_numbers = #tpu.dot_dimension_numbers<[1], [0], [0], [1], [0, 0, 1, 1], [], []>} : vector<16x64xf32>, vector<64x16xf32>, vector<16x16xf32> -> vector<16x16xf32>
    %10 = arith.addf %6, %9 : vector<16x16xf32>
    %cst_10 = arith.constant 0.000000e+00 : f32
    %11 = vector.broadcast %cst_10 : f32 to vector<16x16xf32>
    %12 = arith.cmpf oge, %10, %11 : vector<16x16xf32>
    %cst_11 = arith.constant 2.000000e-01 : f32
    %13 = vector.broadcast %cst_11 : f32 to vector<16x16xf32>
    %14 = arith.mulf %13, %10 : vector<16x16xf32>
    %15 = arith.select %12, %10, %14 : vector<16x16xi1>, vector<16x16xf32>
    %c0_12 = arith.constant 0 : index
    %c0_13 = arith.constant 0 : index
    %c0_14 = arith.constant 0 : index
    %16 = vector.load %arg3[%c0_12, %c0_13, %c0_14] : memref<1x16x16xf32, #tpu.memory_space<vmem>>, vector<1x16x16xf32>
    %17 = vector.shape_cast %16 : vector<1x16x16xf32> to vector<16x16xf32>
    %18 = vector.shape_cast %15 : vector<16x16xf32> to vector<1x16x16xf32>
    tpu.vector_store %arg3[%c0_12, %c0_13, %c0_14], %18 {strides = array<i32>} : memref<1x16x16xf32, #tpu.memory_space<vmem>>, vector<1x16x16xf32>,
    return
  }
  func.func @transform_0(%arg0: i32) -> (i32, i32, i32) {
    %c0_i32 = arith.constant 0 : i32
    %c0_i32_0 = arith.constant 0 : i32
    %c0_i32_1 = arith.constant 0 : i32
    return %arg0, %c0_i32, %c0_i32_0 : i32, i32, i32
  }
  func.func @transform_1(%arg0: i32) -> (i32, i32, i32) {
    %c0_i32 = arith.constant 0 : i32
    %c0_i32_0 = arith.constant 0 : i32
    %c0_i32_1 = arith.constant 0 : i32
    %c0_i32_2 = arith.constant 0 : i32
    return %c0_i32, %c0_i32_0, %c0_i32_1 : i32, i32, i32
  }
  func.func @transform_2(%arg0: i32) -> (i32, i32, i32) {
    %c0_i32 = arith.constant 0 : i32
    %c0_i32_0 = arith.constant 0 : i32
    %c0_i32_1 = arith.constant 0 : i32
    return %arg0, %c0_i32, %c0_i32_0 : i32, i32, i32
  }
}

module attributes {stable_mosaic.version = 11 : i64} {
  func.func @_conv_k4s2p1_kernel(%arg0: i32, %arg1: memref<1x20x24xf32, #tpu.memory_space<vmem>>, %arg2: memref<2x24x8xf32, #tpu.memory_space<vmem>>, %arg3: memref<1x16x8xf32, #tpu.memory_space<vmem>>) attributes {dimension_semantics = [#tpu.dimension_semantics<parallel>], iteration_bounds = array<i64: 2>, scalar_prefetch = 0 : i64, scratch_operands = 0 : i64, tpu.core_type = #tpu.core_type<tc>, window_params = [{transform_indices = @transform_0, window_bounds = array<i64: 1, 20, 24>}, {pipeline_mode = #tpu.pipeline_mode<synchronous>, transform_indices = @transform_1, window_bounds = array<i64: 2, 24, 8>}, {transform_indices = @transform_2, window_bounds = array<i64: 1, 16, 8>}]} {
    %c0 = arith.constant 0 : index
    %c0_0 = arith.constant 0 : index
    %c0_1 = arith.constant 0 : index
    %0 = vector.load %arg1[%c0, %c0_0, %c0_1] : memref<1x20x24xf32, #tpu.memory_space<vmem>>, vector<1x16x24xf32>
    %1 = vector.shape_cast %0 : vector<1x16x24xf32> to vector<16x24xf32>
    %c0_2 = arith.constant 0 : index
    %c4 = arith.constant 4 : index
    %c0_3 = arith.constant 0 : index
    %2 = vector.load %arg1[%c0_2, %c4, %c0_3] : memref<1x20x24xf32, #tpu.memory_space<vmem>>, vector<1x16x24xf32>
    %3 = vector.shape_cast %2 : vector<1x16x24xf32> to vector<16x24xf32>
    %c0_4 = arith.constant 0 : index
    %c0_5 = arith.constant 0 : index
    %c0_6 = arith.constant 0 : index
    %4 = vector.load %arg2[%c0_4, %c0_5, %c0_6] : memref<2x24x8xf32, #tpu.memory_space<vmem>>, vector<1x24x8xf32>
    %5 = vector.shape_cast %4 : vector<1x24x8xf32> to vector<24x8xf32>
    %cst = arith.constant dense<0.000000e+00> : vector<16x8xf32>
    %6 = tpu.matmul %1, %5, %cst {dimension_numbers = #tpu.dot_dimension_numbers<[1], [0], [0], [1], [0, 0, 1, 1], [], []>} : vector<16x24xf32>, vector<24x8xf32>, vector<16x8xf32> -> vector<16x8xf32>
    %c1 = arith.constant 1 : index
    %c0_7 = arith.constant 0 : index
    %c0_8 = arith.constant 0 : index
    %7 = vector.load %arg2[%c1, %c0_7, %c0_8] : memref<2x24x8xf32, #tpu.memory_space<vmem>>, vector<1x24x8xf32>
    %8 = vector.shape_cast %7 : vector<1x24x8xf32> to vector<24x8xf32>
    %cst_9 = arith.constant dense<0.000000e+00> : vector<16x8xf32>
    %9 = tpu.matmul %3, %8, %cst_9 {dimension_numbers = #tpu.dot_dimension_numbers<[1], [0], [0], [1], [0, 0, 1, 1], [], []>} : vector<16x24xf32>, vector<24x8xf32>, vector<16x8xf32> -> vector<16x8xf32>
    %10 = arith.addf %6, %9 : vector<16x8xf32>
    %cst_10 = arith.constant 0.000000e+00 : f32
    %11 = vector.broadcast %cst_10 : f32 to vector<16x8xf32>
    %12 = arith.cmpf oge, %10, %11 : vector<16x8xf32>
    %cst_11 = arith.constant 2.000000e-01 : f32
    %13 = vector.broadcast %cst_11 : f32 to vector<16x8xf32>
    %14 = arith.mulf %13, %10 : vector<16x8xf32>
    %15 = arith.select %12, %10, %14 : vector<16x8xi1>, vector<16x8xf32>
    %c0_12 = arith.constant 0 : index
    %c0_13 = arith.constant 0 : index
    %c0_14 = arith.constant 0 : index
    %16 = vector.load %arg3[%c0_12, %c0_13, %c0_14] : memref<1x16x8xf32, #tpu.memory_space<vmem>>, vector<1x16x8xf32>
    %17 = vector.shape_cast %16 : vector<1x16x8xf32> to vector<16x8xf32>
    %18 = vector.shape_cast %15 : vector<16x8xf32> to vector<1x16x8xf32>
    tpu.vector_store %arg3[%c0_12, %c0_13, %c0_14], %18 {strides = array<i32>} : memref<1x16x8xf32, #tpu.memory_space<vmem>>, vector<1x16x8xf32>,
    return
  }
  func.func @transform_0(%arg0: i32) -> (i32, i32, i32) {
    %c0_i32 = arith.constant 0 : i32
    %c0_i32_0 = arith.constant 0 : i32
    %c0_i32_1 = arith.constant 0 : i32
    return %arg0, %c0_i32, %c0_i32_0 : i32, i32, i32
  }
  func.func @transform_1(%arg0: i32) -> (i32, i32, i32) {
    %c0_i32 = arith.constant 0 : i32
    %c0_i32_0 = arith.constant 0 : i32
    %c0_i32_1 = arith.constant 0 : i32
    %c0_i32_2 = arith.constant 0 : i32
    return %c0_i32, %c0_i32_0, %c0_i32_1 : i32, i32, i32
  }
  func.func @transform_2(%arg0: i32) -> (i32, i32, i32) {
    %c0_i32 = arith.constant 0 : i32
    %c0_i32_0 = arith.constant 0 : i32
    %c0_i32_1 = arith.constant 0 : i32
    return %arg0, %c0_i32, %c0_i32_0 : i32, i32, i32
  }
}

module attributes {stable_mosaic.version = 11 : i64} {
  func.func @_conv_k4s2p1_kernel(%arg0: i32, %arg1: memref<1x6x64xf32, #tpu.memory_space<vmem>>, %arg2: memref<2x64x16xf32, #tpu.memory_space<vmem>>, %arg3: memref<1x4x16xf32, #tpu.memory_space<vmem>>) attributes {dimension_semantics = [#tpu.dimension_semantics<parallel>], iteration_bounds = array<i64: 2>, scalar_prefetch = 0 : i64, scratch_operands = 0 : i64, tpu.core_type = #tpu.core_type<tc>, window_params = [{transform_indices = @transform_0, window_bounds = array<i64: 1, 6, 64>}, {pipeline_mode = #tpu.pipeline_mode<synchronous>, transform_indices = @transform_1, window_bounds = array<i64: 2, 64, 16>}, {transform_indices = @transform_2, window_bounds = array<i64: 1, 4, 16>}]} {
    %c0 = arith.constant 0 : index
    %c0_0 = arith.constant 0 : index
    %c0_1 = arith.constant 0 : index
    %0 = vector.load %arg1[%c0, %c0_0, %c0_1] : memref<1x6x64xf32, #tpu.memory_space<vmem>>, vector<1x4x64xf32>
    %1 = vector.shape_cast %0 : vector<1x4x64xf32> to vector<4x64xf32>
    %c0_2 = arith.constant 0 : index
    %c2 = arith.constant 2 : index
    %c0_3 = arith.constant 0 : index
    %2 = vector.load %arg1[%c0_2, %c2, %c0_3] : memref<1x6x64xf32, #tpu.memory_space<vmem>>, vector<1x4x64xf32>
    %3 = vector.shape_cast %2 : vector<1x4x64xf32> to vector<4x64xf32>
    %c0_4 = arith.constant 0 : index
    %c0_5 = arith.constant 0 : index
    %c0_6 = arith.constant 0 : index
    %4 = vector.load %arg2[%c0_4, %c0_5, %c0_6] : memref<2x64x16xf32, #tpu.memory_space<vmem>>, vector<1x64x16xf32>
    %5 = vector.shape_cast %4 : vector<1x64x16xf32> to vector<64x16xf32>
    %cst = arith.constant dense<0.000000e+00> : vector<4x16xf32>
    %6 = tpu.matmul %1, %5, %cst {dimension_numbers = #tpu.dot_dimension_numbers<[1], [0], [0], [1], [0, 0, 1, 1], [], []>} : vector<4x64xf32>, vector<64x16xf32>, vector<4x16xf32> -> vector<4x16xf32>
    %c1 = arith.constant 1 : index
    %c0_7 = arith.constant 0 : index
    %c0_8 = arith.constant 0 : index
    %7 = vector.load %arg2[%c1, %c0_7, %c0_8] : memref<2x64x16xf32, #tpu.memory_space<vmem>>, vector<1x64x16xf32>
    %8 = vector.shape_cast %7 : vector<1x64x16xf32> to vector<64x16xf32>
    %cst_9 = arith.constant dense<0.000000e+00> : vector<4x16xf32>
    %9 = tpu.matmul %3, %8, %cst_9 {dimension_numbers = #tpu.dot_dimension_numbers<[1], [0], [0], [1], [0, 0, 1, 1], [], []>} : vector<4x64xf32>, vector<64x16xf32>, vector<4x16xf32> -> vector<4x16xf32>
    %10 = arith.addf %6, %9 : vector<4x16xf32>
    %cst_10 = arith.constant 0.000000e+00 : f32
    %11 = vector.broadcast %cst_10 : f32 to vector<4x16xf32>
    %12 = arith.cmpf oge, %10, %11 : vector<4x16xf32>
    %cst_11 = arith.constant 2.000000e-01 : f32
    %13 = vector.broadcast %cst_11 : f32 to vector<4x16xf32>
    %14 = arith.mulf %13, %10 : vector<4x16xf32>
    %15 = arith.select %12, %10, %14 : vector<4x16xi1>, vector<4x16xf32>
    %c0_12 = arith.constant 0 : index
    %c0_13 = arith.constant 0 : index
    %c0_14 = arith.constant 0 : index
    %16 = vector.load %arg3[%c0_12, %c0_13, %c0_14] : memref<1x4x16xf32, #tpu.memory_space<vmem>>, vector<1x4x16xf32>
    %17 = vector.shape_cast %16 : vector<1x4x16xf32> to vector<4x16xf32>
    %18 = vector.shape_cast %15 : vector<4x16xf32> to vector<1x4x16xf32>
    tpu.vector_store %arg3[%c0_12, %c0_13, %c0_14], %18 {strides = array<i32>} : memref<1x4x16xf32, #tpu.memory_space<vmem>>, vector<1x4x16xf32>,
    return
  }
  func.func @transform_0(%arg0: i32) -> (i32, i32, i32) {
    %c0_i32 = arith.constant 0 : i32
    %c0_i32_0 = arith.constant 0 : i32
    %c0_i32_1 = arith.constant 0 : i32
    return %arg0, %c0_i32, %c0_i32_0 : i32, i32, i32
  }
  func.func @transform_1(%arg0: i32) -> (i32, i32, i32) {
    %c0_i32 = arith.constant 0 : i32
    %c0_i32_0 = arith.constant 0 : i32
    %c0_i32_1 = arith.constant 0 : i32
    %c0_i32_2 = arith.constant 0 : i32
    return %c0_i32, %c0_i32_0, %c0_i32_1 : i32, i32, i32
  }
  func.func @transform_2(%arg0: i32) -> (i32, i32, i32) {
    %c0_i32 = arith.constant 0 : i32
    %c0_i32_0 = arith.constant 0 : i32
    %c0_i32_1 = arith.constant 0 : i32
    return %arg0, %c0_i32, %c0_i32_0 : i32, i32, i32
  }
}

module attributes {stable_mosaic.version = 11 : i64} {
  func.func @_fc_kernel(%arg0: i32, %arg1: memref<2x320xf32, #tpu.memory_space<vmem>>, %arg2: memref<320x6xf32, #tpu.memory_space<vmem>>, %arg3: memref<2x6xf32, #tpu.memory_space<vmem>>) attributes {dimension_semantics = [#tpu.dimension_semantics<arbitrary>], iteration_bounds = array<i64: 1>, scalar_prefetch = 0 : i64, scratch_operands = 0 : i64, tpu.core_type = #tpu.core_type<tc>, window_params = [{pipeline_mode = #tpu.pipeline_mode<synchronous>, transform_indices = @transform_0, window_bounds = array<i64: 2, 320>}, {pipeline_mode = #tpu.pipeline_mode<synchronous>, transform_indices = @transform_1, window_bounds = array<i64: 320, 6>}, {pipeline_mode = #tpu.pipeline_mode<synchronous>, transform_indices = @transform_2, window_bounds = array<i64: 2, 6>}]} {
    %c0 = arith.constant 0 : index
    %c0_0 = arith.constant 0 : index
    %0 = vector.load %arg1[%c0, %c0_0] : memref<2x320xf32, #tpu.memory_space<vmem>>, vector<2x320xf32>
    %c0_1 = arith.constant 0 : index
    %c0_2 = arith.constant 0 : index
    %1 = vector.load %arg2[%c0_1, %c0_2] : memref<320x6xf32, #tpu.memory_space<vmem>>, vector<320x6xf32>
    %cst = arith.constant dense<0.000000e+00> : vector<2x6xf32>
    %2 = tpu.matmul %0, %1, %cst {dimension_numbers = #tpu.dot_dimension_numbers<[1], [0], [0], [1], [0, 0, 1, 1], [], []>} : vector<2x320xf32>, vector<320x6xf32>, vector<2x6xf32> -> vector<2x6xf32>
    %c0_3 = arith.constant 0 : index
    %c0_4 = arith.constant 0 : index
    %3 = vector.load %arg3[%c0_3, %c0_4] : memref<2x6xf32, #tpu.memory_space<vmem>>, vector<2x6xf32>
    tpu.vector_store %arg3[%c0_3, %c0_4], %2 {strides = array<i32>} : memref<2x6xf32, #tpu.memory_space<vmem>>, vector<2x6xf32>,
    return
  }
  func.func @transform_0(%arg0: i32) -> (i32, i32) {
    %c0_i32 = arith.constant 0 : i32
    %c0_i32_0 = arith.constant 0 : i32
    %c0_i32_1 = arith.constant 0 : i32
    return %c0_i32, %c0_i32_0 : i32, i32
  }
  func.func @transform_1(%arg0: i32) -> (i32, i32) {
    %c0_i32 = arith.constant 0 : i32
    %c0_i32_0 = arith.constant 0 : i32
    %c0_i32_1 = arith.constant 0 : i32
    return %c0_i32, %c0_i32_0 : i32, i32
  }
  func.func @transform_2(%arg0: i32) -> (i32, i32) {
    %c0_i32 = arith.constant 0 : i32
    %c0_i32_0 = arith.constant 0 : i32
    %c0_i32_1 = arith.constant 0 : i32
    return %c0_i32, %c0_i32_0 : i32, i32
  }
}

</mosaic_0001>

<llo_original>
// kernel: discriminator_forward.5
$region0: #{discriminator_forward.5}
  #allocation0 [shape = 'u32[]', space=smem, size = 0x4, offset = 0x4, fixed_abs, tag = 'smem constant byte address 0x4 - core index']
  #allocation1 [shape = 'u32[144,128]{1,0:T(1,128)}', space=vmem, size = 0x12000, scoped, tag = 'internal scratch']
  %s0 = inlined_call_operand.hbm [shape: f32[2,72,24], index: 0, kind: input, shape index: {}]
  %s1 = inlined_call_operand.hbm [shape: f32[2,24,8], index: 1, kind: input, shape index: {}]
  %s2 = inlined_call_operand.hbm [shape: f32[2,64,8], index: 2, kind: output, shape index: {}]
  %s3 = sld [smem:[#allocation0]]
  $region49: #{discriminator_forward.5} parent=0
    _
  %s5 = ssub.s32 1, %s3
  %s6 = scalar_select 0, %s5, %s3
  $region1: #{discriminator_forward.5} parent=0
    #allocation2 [shape = 'u8[73728]{0}', space=vmem, size = 0x12000, scoped, tag = 'input window, operand 0']
    #allocation3 [shape = 's32[2]{0}', space=sflag, size = 0x8, scoped, tag = 'scoped memory for discriminator_forward.5']
    #allocation4 [shape = 's32[2]{0}', space=sflag, size = 0x8, scoped, tag = 'scoped memory for discriminator_forward.5']
    #allocation5 [shape = 'u8[24576]{0}', space=vmem, size = 0x6000, scoped, tag = 'input window, operand 1, single buffered']
    #allocation6 [shape = 's32[1]{0}', space=sflag, size = 0x4, scoped, tag = 'scoped memory for discriminator_forward.5']
    #allocation7 [shape = 'u8[65536]{0}', space=vmem, size = 0x10000, scoped, tag = 'output window, operand 0']
    %7 = vsyncpa [#allocation3], 0
    %s8 = scalar_lea.sflag [#allocation3], 1
    %9 = vsyncpa %s8, 0
    %10 = vsyncpa [#allocation6], 0
    %11 = vsyncpa [#allocation4], 0
    %s12 = scalar_lea.sflag [#allocation4], 1
    %13 = vsyncpa %s12, 0
    loop: start=0, step=1, limit=4
    $region2: #{discriminator_forward.5} parent=1 // loop_pre_header
      _
    $region3: #{discriminator_forward.5} parent=1 // loop_header
      %s15 = sphi 0, %s19
      %p16 = scmp.ge.s32.totalorder %s15, 4
      %s25 = sphi 0, %s27
      %s28 = sphi 0, %s25
      %s29 = sphi 0, %s28
      %s45 = sphi 0, %s29
      %s49 = sphi 0, %s49
      %s51 = sphi 0, %s49
      %s52 = sphi 0, %s51
      %s66 = sphi 0, %s52
      %s72 = sphi 0, %s74
      %s75 = sphi 0, %s72
      %s76 = sphi 0, %s75
      %s92 = sphi 0, %s76
    $region4: #{discriminator_forward.5} parent=1 // loop_header_branch
      %18 = sbr.rel (%p16) target = $region8
    $region5: #{discriminator_forward.5} parent=1 // loop_body
      %s20 = ssub.s32 %s15, 1
      %s21 = ssub.s32 %s15, 2
      %s22 = sadd.s32 %s15, 1
      %s23 = ssub.s32 %s15, %s22
      %p24 = scmp.eq.s32.totalorder %s23, 0
      %s26 = sadd.s32 %s25, 1
      %s27 = scalar_select %p24, %s25, %s26
      %p30 = pneg %p24
      %p31 = scmp.eq.s32.totalorder %s15, 1
      %p32 = por %p30, %p31
      %p33 = scmp.ne.s32.totalorder %s25, %s28
      %p34 = scmp.eq.s32.totalorder %s15, 0
      %p35 = por %p33, %p34
      %p36 = scmp.ne.s32.totalorder %s25, %s28
      %p37 = scmp.eq.s32.totalorder %s20, 1
      %p38 = por %p36, %p37
      %p39 = scmp.ne.s32.totalorder %s28, %s29
      %p40 = scmp.eq.s32.totalorder %s20, 0
      %p41 = por %p39, %p40
      %p42 = scmp.ne.s32.totalorder %s28, %s29
      %p43 = scmp.eq.s32.totalorder %s21, 1
      %p44 = por %p42, %p43
      %p46 = scmp.ne.s32.totalorder %s29, %s45
      %p47 = scmp.eq.s32.totalorder %s21, 0
      %p48 = por %p46, %p47
      %s50 = sadd.s32 %s49, 1
      %p53 = scmp.eq.s32.totalorder %s15, 1
      %p54 = scmp.ne.s32.totalorder %s49, %s51
      %p55 = scmp.eq.s32.totalorder %s15, 0
      %p56 = por %p54, %p55
      %p57 = scmp.ne.s32.totalorder %s49, %s51
      %p58 = scmp.eq.s32.totalorder %s20, 1
      %p59 = por %p57, %p58
      %p60 = scmp.ne.s32.totalorder %s51, %s52
      %p61 = scmp.eq.s32.totalorder %s20, 0
      %p62 = por %p60, %p61
      %p63 = scmp.ne.s32.totalorder %s51, %s52
      %p64 = scmp.eq.s32.totalorder %s21, 1
      %p65 = por %p63, %p64
      %p67 = scmp.ne.s32.totalorder %s52, %s66
      %p68 = scmp.eq.s32.totalorder %s21, 0
      %p69 = por %p67, %p68
      %s70 = ssub.s32 %s15, %s22
      %p71 = scmp.eq.s32.totalorder %s70, 0
      %s73 = sadd.s32 %s72, 1
      %s74 = scalar_select %p71, %s72, %s73
      %p77 = pneg %p71
      %p78 = scmp.eq.s32.totalorder %s15, 1
      %p79 = por %p77, %p78
      %p80 = scmp.ne.s32.totalorder %s72, %s75
      %p81 = scmp.eq.s32.totalorder %s15, 0
      %p82 = por %p80, %p81
      %p83 = scmp.ne.s32.totalorder %s72, %s75
      %p84 = scmp.eq.s32.totalorder %s20, 1
      %p85 = por %p83, %p84
      %p86 = scmp.ne.s32.totalorder %s75, %s76
      %p87 = scmp.eq.s32.totalorder %s20, 0
      %p88 = por %p86, %p87
      %p89 = scmp.ne.s32.totalorder %s75, %s76
      %p90 = scmp.eq.s32.totalorder %s21, 1
      %p91 = por %p89, %p90
      %p93 = scmp.ne.s32.totalorder %s76, %s92
      %p94 = scmp.eq.s32.totalorder %s21, 0
      %p95 = por %p93, %p94
      %p96 = scmp.le.s32.totalorder 1, %s15
      %p97 = scmp.lt.s32.totalorder %s15, 3
      %p98 = pnand %p96, %p97
      %p99 = pneg %p98
      // Predicated region
      $region9: #{discriminator_forward.5} parent=5 // pred_check
        _
      $region10: #{discriminator_forward.5} parent=5 // pred_check_branch
        %101 = sbr.rel (%p98) target = $region12
      $region11: #{discriminator_forward.5} parent=5 // pred_region
        %s102 = ssub.s32 %s15, 1
        // Predicated region
        $region13: #{discriminator_forward.5} parent=11 // pred_check
          %p103 = pneg %p62
        $region14: #{discriminator_forward.5} parent=11 // pred_check_branch
          %105 = sbr.rel (%p103) target = $region16
        $region15: #{discriminator_forward.5} parent=11 // pred_region
          %s107 = ssub.s32 768, 768
          %108 = vsyncadd [#allocation6], %s107
          %s109 = sshll.u32 [#allocation5], 4
          %s110 = int_to_ptr.vmem [resolvable:$true] %s109
          %115 = dma.hbm_to_vmem [thread:$0]  %s1, 768, %s110, [#allocation6], 128, 128, 8
        $region16: #{discriminator_forward.5} parent=11 // pred_fallthru
          _
      $region12: #{discriminator_forward.5} parent=5 // pred_fallthru
        _
      %p116 = scmp.lt.s32.totalorder %s15, 2
      // Predicated region
      $region17: #{discriminator_forward.5} parent=5 // pred_check
        %p117 = pneg %p116
      $region18: #{discriminator_forward.5} parent=5 // pred_check_branch
        %119 = sbr.rel (%p117) target = $region20
      $region19: #{discriminator_forward.5} parent=5 // pred_region
        // Predicated region
        $region21: #{discriminator_forward.5} parent=19 // pred_check
          %p120 = pneg %p35
        $region22: #{discriminator_forward.5} parent=19 // pred_check_branch
          %122 = sbr.rel (%p120) target = $region24
        $region23: #{discriminator_forward.5} parent=19 // pred_region
          %s123 = sand.u32 %s25, 1
          %s124 = scalar_lea.sflag [#allocation3], %s123
          %s125 = sand.u32 %s25, 1
          %s126 = smul.addr %s125, 72
          %s127 = scalar_lea.vmem [#allocation2], %s126
          %s129 = ssub.s32 1152, 1152
          %130 = vsyncadd %s124, %s129
          %s131 = smul.addr %s15, 9
          %s132 = smul.addr %s131, 128
          %s133 = scalar_lea.hbm %s0, %s132
          %s134 = sshll.u32 %s127, 4
          %s135 = int_to_ptr.vmem [resolvable:$true] %s134
          %140 = dma.hbm_to_vmem [thread:$0]  %s133, 1152, %s135, %s124, 128, 128, 8
        $region24: #{discriminator_forward.5} parent=19 // pred_fallthru
          _
      $region20: #{discriminator_forward.5} parent=5 // pred_fallthru
        _
      %p141 = scmp.le.s32.totalorder 1, %s15
      %p142 = scmp.lt.s32.totalorder %s15, 3
      %p143 = pnand %p141, %p142
      %p144 = pneg %p143
      // Predicated region
      $region25: #{discriminator_forward.5} parent=5 // pred_check
        _
      $region26: #{discriminator_forward.5} parent=5 // pred_check_branch
        %146 = sbr.rel (%p143) target = $region28
      $region27: #{discriminator_forward.5} parent=5 // pred_region
        %s147 = ssub.s32 %s15, 1
        %s148 = sand.u32 %s28, 1
        %s149 = scalar_lea.sflag [#allocation3], %s148
        %s150 = sand.u32 %s28, 1
        %s151 = smul.addr %s150, 72
        %s152 = scalar_lea.vmem [#allocation2], %s151
        // Predicated region
        $region29: #{discriminator_forward.5} parent=27 // pred_check
          %p153 = pneg %p41
        $region30: #{discriminator_forward.5} parent=27 // pred_check_branch
          %155 = sbr.rel (%p153) target = $region32
        $region31: #{discriminator_forward.5} parent=27 // pred_region
          %156 = dma.done %s149, 1152
        $region32: #{discriminator_forward.5} parent=27 // pred_fallthru
          _
        // Predicated region
        $region33: #{discriminator_forward.5} parent=27 // pred_check
          %p157 = pneg %p62
        $region34: #{discriminator_forward.5} parent=27 // pred_check_branch
          %159 = sbr.rel (%p157) target = $region36
        $region35: #{discriminator_forward.5} parent=27 // pred_region
          %160 = dma.done [#allocation6], 768
        $region36: #{discriminator_forward.5} parent=27 // pred_fallthru
          _
        %s161 = sand.u32 %s28, 1
        %s162 = scalar_lea.sflag [#allocation3], %s161
        %s163 = sand.u32 %s28, 1
        %s164 = smul.addr %s163, 72
        %s165 = scalar_lea.vmem [#allocation2], %s164
        %p166 = pneg %p41
        %p167 = pneg %p38
        %p168 = pneg %p62
        %p169 = pneg %p59
        %p170 = pneg %p88
        %p171 = pneg %p85
        %s172 = sand.u32 %s75, 1
        %s173 = scalar_lea.sflag [#allocation4], %s172
        %s174 = sand.u32 %s75, 1
        %s175 = smul.addr %s174, 64
        %s176 = scalar_lea.vmem [#allocation7], %s175
        %v177 = vld [vmem:[%s152] sm:$0xff]
        %v178 = vld [vmem:[%s152 + $0x8] sm:$0xff]
        %v179 = vld [vmem:[%s152 + $0x10] sm:$0xff]
        %v180 = vld [vmem:[%s152 + $0x18] sm:$0xff]
        %v181 = vld [vmem:[%s152 + $0x20] sm:$0xff]
        %v182 = vld [vmem:[%s152 + $0x28] sm:$0xff]
        %v183 = vld [vmem:[%s152 + $0x30] sm:$0xff]
        %v184 = vld [vmem:[%s152 + $0x38] sm:$0xff]
        %v185 = vld [vmem:[%s152 + $0x40] sm:$0xff]
        %v186 = vld [vmem:[#allocation5] sm:$0xff]
        %v187 = vld [vmem:[#allocation5 + $0x8] sm:$0xff]
        %v188 = vld [vmem:[#allocation5 + $0x10] sm:$0xff]
        %s189 = scalar_lea.vmem [#allocation5], 24
        %v190 = vld [vmem:[%s189] sm:$0xff]
        %v191 = vld [vmem:[%s189 + $0x8] sm:$0xff]
        %v192 = vld [vmem:[%s189 + $0x10] sm:$0xff]
        %vm193 = vcmask 195584
        %v195 = vsel %vm193, %v178, 0
        %v198 = vsel %vm193, %v179, 0
        %v201 = vsel %vm193, %v180, 0
        %v204 = vsel %vm193, %v181, 0
        %v207 = vsel %vm193, %v182, 0
        %v210 = vsel %vm193, %v183, 0
        %v213 = vsel %vm193, %v184, 0
        %v216 = vsel %vm193, %v185, 0
        %218 = vmatprep.subr.mxu0 0.0
        %219 = vmatpush1.msra.mxu0 %v190
        %220 = vmatprep.subr.mxu0 0.0
        %221 = vmatpush1.msra.mxu0 %v191
        %222 = vmatprep.subr.mxu0 0.0
        %223 = vmatpush1.msra.mxu0 %v192
        %224 = vmatprep.subr.mxu0 0.0
        %225 = vmatpush1.msra.mxu0 0.0
        %226 = vmatprep.subr.mxu0 0.0
        %227 = vmatpush1.msra.mxu0 0.0
        %228 = vmatprep.subr.mxu0 0.0
        %229 = vmatpush1.msra.mxu0 0.0
        %230 = vmatprep.subr.mxu0 0.0
        %231 = vmatpush1.msra.mxu0 0.0
        %232 = vmatprep.subr.mxu0 0.0
        %233 = vmatpush1.msra.mxu0 0.0
        %234 = vmatprep.subr.mxu0 0.0
        %235 = vmatpush1.msra.mxu0 0.0
        %236 = vmatprep.subr.mxu0 0.0
        %237 = vmatpush1.msra.mxu0 0.0
        %238 = vmatprep.subr.mxu0 0.0
        %239 = vmatpush1.msra.mxu0 0.0
        %240 = vmatprep.subr.mxu0 0.0
        %241 = vmatpush1.msra.mxu0 0.0
        %242 = vmatprep.subr.mxu0 0.0
        %243 = vmatpush1.msra.mxu0 0.0
        %244 = vmatprep.subr.mxu0 0.0
        %245 = vmatpush1.msra.mxu0 0.0
        %246 = vmatprep.subr.mxu0 0.0
        %247 = vmatpush1.msra.mxu0 0.0
        %248 = vmatprep.subr.mxu0 0.0
        %249 = vmatpush1.msra.mxu0 0.0
        %250 = vmatprep.subr.mxu0 0.0
        %251 = vmatpush1.msra.mxu0 0.0
        %252 = vmatprep.subr.mxu0 0.0
        %253 = vmatpush1.msra.mxu0 0.0
        %254 = vmatprep.subr.mxu0 0.0
        %255 = vmatpush1.msra.mxu0 0.0
        %256 = vmatprep.subr.mxu0 0.0
        %257 = vmatpush1.msra.mxu0 0.0
        %258 = vmatprep.subr.mxu0 0.0
        %259 = vmatpush1.msra.mxu0 0.0
        %260 = vmatprep.subr.mxu0 0.0
        %261 = vmatpush1.msra.mxu0 0.0
        %262 = vmatprep.subr.mxu0 0.0
        %263 = vmatpush1.msra.mxu0 0.0
        %264 = vmatprep.subr.mxu0 0.0
        %265 = vmatpush1.msra.mxu0 0.0
        %266 = vmatprep.subr.mxu0 0.0
        %267 = vmatpush1.msra.mxu0 0.0
        %268 = vmatprep.subr.mxu0 0.0
        %269 = vmatpush1.msra.mxu0 0.0
        %270 = vmatprep.subr.mxu0 0.0
        %271 = vmatpush1.msra.mxu0 0.0
        %272 = vmatprep.subr.mxu0 0.0
        %273 = vmatpush1.msra.mxu0 0.0
        %274 = vmatprep.subr.mxu0 0.0
        %275 = vmatpush1.msra.mxu0 0.0
        %276 = vmatprep.subr.mxu0 0.0
        %277 = vmatpush1.msra.mxu0 0.0
        %278 = vmatprep.subr.mxu0 0.0
        %279 = vmatpush1.msra.mxu0 0.0
        %280 = vmatprep.subr.mxu0 0.0
        %281 = vmatpush1.msra.mxu0 0.0
        %282 = vmatprep.mubr.f32.mxu0 0.0
        %283 = vmatmul.mubr.f32.gmra.mrb[0].mxu0 %v195
        %v284 = vpop.f32.mrb[0].mxu0
        %v285 = vadd.f32 0.0, %v284
        %v286 = vpop.f32.mrb[0].mxu0
        %287 = vmatprep.mubr.f32.mxu0 0.0
        %288 = vmatmul.mubr.f32.gmra.mrb[0].mxu0 %v198
        %v289 = vpop.f32.mrb[0].mxu0
        %v290 = vadd.f32 0.0, %v289
        %v291 = vpop.f32.mrb[0].mxu0
        %292 = vmatprep.mubr.f32.mxu0 0.0
        %293 = vmatmul.mubr.f32.gmra.mrb[0].mxu0 %v201
        %v294 = vpop.f32.mrb[0].mxu0
        %v295 = vadd.f32 0.0, %v294
        %v296 = vpop.f32.mrb[0].mxu0
        %297 = vmatprep.mubr.f32.mxu0 0.0
        %298 = vmatmul.mubr.f32.gmra.mrb[0].mxu0 %v204
        %v299 = vpop.f32.mrb[0].mxu0
        %v300 = vadd.f32 0.0, %v299
        %v301 = vpop.f32.mrb[0].mxu0
        %302 = vmatprep.mubr.f32.mxu0 0.0
        %303 = vmatmul.mubr.f32.gmra.mrb[0].mxu0 %v207
        %v304 = vpop.f32.mrb[0].mxu0
        %v305 = vadd.f32 0.0, %v304
        %v306 = vpop.f32.mrb[0].mxu0
        %307 = vmatprep.mubr.f32.mxu0 0.0
        %308 = vmatmul.mubr.f32.gmra.mrb[0].mxu0 %v210
        %v309 = vpop.f32.mrb[0].mxu0
        %v310 = vadd.f32 0.0, %v309
        %v311 = vpop.f32.mrb[0].mxu0
        %312 = vmatprep.mubr.f32.mxu0 0.0
        %313 = vmatmul.mubr.f32.gmra.mrb[0].mxu0 %v213
        %v314 = vpop.f32.mrb[0].mxu0
        %v315 = vadd.f32 0.0, %v314
        %v316 = vpop.f32.mrb[0].mxu0
        %317 = vmatprep.mubr.f32.mxu0 0.0
        %318 = vmatmul.mubr.f32.gmra.mrb[0].mxu0 %v216
        %v319 = vpop.f32.mrb[0].mxu0
        %v320 = vadd.f32 0.0, %v319
        %v321 = vpop.f32.mrb[0].mxu0
        %322 = vdwg.mxu0
        %v324 = vsel %vm193, %v177, 0
        %326 = vmatprep.subr.mxu0 0.0
        %327 = vmatpush1.msra.mxu0 %v186
        %328 = vmatprep.subr.mxu0 0.0
        %329 = vmatpush1.msra.mxu0 %v187
        %330 = vmatprep.subr.mxu0 0.0
        %331 = vmatpush1.msra.mxu0 %v188
        %332 = vmatprep.subr.mxu0 0.0
        %333 = vmatpush1.msra.mxu0 0.0
        %334 = vmatprep.subr.mxu0 0.0
        %335 = vmatpush1.msra.mxu0 0.0
        %336 = vmatprep.subr.mxu0 0.0
        %337 = vmatpush1.msra.mxu0 0.0
        %338 = vmatprep.subr.mxu0 0.0
        %339 = vmatpush1.msra.mxu0 0.0
        %340 = vmatprep.subr.mxu0 0.0
        %341 = vmatpush1.msra.mxu0 0.0
        %342 = vmatprep.subr.mxu0 0.0
        %343 = vmatpush1.msra.mxu0 0.0
        %344 = vmatprep.subr.mxu0 0.0
        %345 = vmatpush1.msra.mxu0 0.0
        %346 = vmatprep.subr.mxu0 0.0
        %347 = vmatpush1.msra.mxu0 0.0
        %348 = vmatprep.subr.mxu0 0.0
        %349 = vmatpush1.msra.mxu0 0.0
        %350 = vmatprep.subr.mxu0 0.0
        %351 = vmatpush1.msra.mxu0 0.0
        %352 = vmatprep.subr.mxu0 0.0
        %353 = vmatpush1.msra.mxu0 0.0
        %354 = vmatprep.subr.mxu0 0.0
        %355 = vmatpush1.msra.mxu0 0.0
        %356 = vmatprep.subr.mxu0 0.0
        %357 = vmatpush1.msra.mxu0 0.0
        %358 = vmatprep.subr.mxu0 0.0
        %359 = vmatpush1.msra.mxu0 0.0
        %360 = vmatprep.subr.mxu0 0.0
        %361 = vmatpush1.msra.mxu0 0.0
        %362 = vmatprep.subr.mxu0 0.0
        %363 = vmatpush1.msra.mxu0 0.0
        %364 = vmatprep.subr.mxu0 0.0
        %365 = vmatpush1.msra.mxu0 0.0
        %366 = vmatprep.subr.mxu0 0.0
        %367 = vmatpush1.msra.mxu0 0.0
        %368 = vmatprep.subr.mxu0 0.0
        %369 = vmatpush1.msra.mxu0 0.0
        %370 = vmatprep.subr.mxu0 0.0
        %371 = vmatpush1.msra.mxu0 0.0
        %372 = vmatprep.subr.mxu0 0.0
        %373 = vmatpush1.msra.mxu0 0.0
        %374 = vmatprep.subr.mxu0 0.0
        %375 = vmatpush1.msra.mxu0 0.0
        %376 = vmatprep.subr.mxu0 0.0
        %377 = vmatpush1.msra.mxu0 0.0
        %378 = vmatprep.subr.mxu0 0.0
        %379 = vmatpush1.msra.mxu0 0.0
        %380 = vmatprep.subr.mxu0 0.0
        %381 = vmatpush1.msra.mxu0 0.0
        %382 = vmatprep.subr.mxu0 0.0
        %383 = vmatpush1.msra.mxu0 0.0
        %384 = vmatprep.subr.mxu0 0.0
        %385 = vmatpush1.msra.mxu0 0.0
        %386 = vmatprep.subr.mxu0 0.0
        %387 = vmatpush1.msra.mxu0 0.0
        %388 = vmatprep.subr.mxu0 0.0
        %389 = vmatpush1.msra.mxu0 0.0
        %390 = vmatprep.mubr.f32.mxu0 0.0
        %391 = vmatmul.mubr.f32.gmra.mrb[0].mxu0 %v324
        %v392 = vpop.f32.mrb[0].mxu0
        %v393 = vadd.f32 %v285, %v392
        %v394 = vpop.f32.mrb[0].mxu0
        %395 = vmatprep.mubr.f32.mxu0 0.0
        %396 = vmatmul.mubr.f32.gmra.mrb[0].mxu0 %v195
        %v397 = vpop.f32.mrb[0].mxu0
        %v398 = vadd.f32 %v290, %v397
        %v399 = vpop.f32.mrb[0].mxu0
        %400 = vmatprep.mubr.f32.mxu0 0.0
        %401 = vmatmul.mubr.f32.gmra.mrb[0].mxu0 %v198
        %v402 = vpop.f32.mrb[0].mxu0
        %v403 = vadd.f32 %v295, %v402
        %v404 = vpop.f32.mrb[0].mxu0
        %405 = vmatprep.mubr.f32.mxu0 0.0
        %406 = vmatmul.mubr.f32.gmra.mrb[0].mxu0 %v201
        %v407 = vpop.f32.mrb[0].mxu0
        %v408 = vadd.f32 %v300, %v407
        %v409 = vpop.f32.mrb[0].mxu0
        %410 = vmatprep.mubr.f32.mxu0 0.0
        %411 = vmatmul.mubr.f32.gmra.mrb[0].mxu0 %v204
        %v412 = vpop.f32.mrb[0].mxu0
        %v413 = vadd.f32 %v305, %v412
        %v414 = vpop.f32.mrb[0].mxu0
        %415 = vmatprep.mubr.f32.mxu0 0.0
        %416 = vmatmul.mubr.f32.gmra.mrb[0].mxu0 %v207
        %v417 = vpop.f32.mrb[0].mxu0
        %v418 = vadd.f32 %v310, %v417
        %v419 = vpop.f32.mrb[0].mxu0
        %420 = vmatprep.mubr.f32.mxu0 0.0
        %421 = vmatmul.mubr.f32.gmra.mrb[0].mxu0 %v210
        %v422 = vpop.f32.mrb[0].mxu0
        %v423 = vadd.f32 %v315, %v422
        %v424 = vpop.f32.mrb[0].mxu0
        %425 = vmatprep.mubr.f32.mxu0 0.0
        %426 = vmatmul.mubr.f32.gmra.mrb[0].mxu0 %v213
        %v427 = vpop.f32.mrb[0].mxu0
        %v428 = vadd.f32 %v320, %v427
        %v429 = vpop.f32.mrb[0].mxu0
        %430 = vdwg.mxu0
        %vm431 = vcmp.ge.f32.partialorder %v393, 0.0
        %vm432 = vcmp.ge.f32.partialorder %v398, 0.0
        %vm433 = vcmp.ge.f32.partialorder %v403, 0.0
        %vm434 = vcmp.ge.f32.partialorder %v408, 0.0
        %vm435 = vcmp.ge.f32.partialorder %v413, 0.0
        %vm436 = vcmp.ge.f32.partialorder %v418, 0.0
        %vm437 = vcmp.ge.f32.partialorder %v423, 0.0
        %vm438 = vcmp.ge.f32.partialorder %v428, 0.0
        %v439 = vmul.f32 %v393, 0.2
        %v440 = vmul.f32 %v398, 0.2
        %v441 = vmul.f32 %v403, 0.2
        %v442 = vmul.f32 %v408, 0.2
        %v443 = vmul.f32 %v413, 0.2
        %v444 = vmul.f32 %v418, 0.2
        %v445 = vmul.f32 %v423, 0.2
        %v446 = vmul.f32 %v428, 0.2
        %v447 = vsel %vm431, %v393, %v439
        %v448 = vsel %vm432, %v398, %v440
        %v449 = vsel %vm433, %v403, %v441
        %v450 = vsel %vm434, %v408, %v442
        %v451 = vsel %vm435, %v413, %v443
        %v452 = vsel %vm436, %v418, %v444
        %v453 = vsel %vm437, %v423, %v445
        %v454 = vsel %vm438, %v428, %v446
        %vm455 = vcmask 64512
        %456 = vst.msk [vmem:[%s176] sm:$0xff] %vm455, %v447
        %457 = vst.msk [vmem:[%s176 + $0x8] sm:$0xff] %vm455, %v448
        %458 = vst.msk [vmem:[%s176 + $0x10] sm:$0xff] %vm455, %v449
        %459 = vst.msk [vmem:[%s176 + $0x18] sm:$0xff] %vm455, %v450
        %460 = vst.msk [vmem:[%s176 + $0x20] sm:$0xff] %vm455, %v451
        %461 = vst.msk [vmem:[%s176 + $0x28] sm:$0xff] %vm455, %v452
        %462 = vst.msk [vmem:[%s176 + $0x30] sm:$0xff] %vm455, %v453
        %463 = vst.msk [vmem:[%s176 + $0x38] sm:$0xff] %vm455, %v454
        %s464 = sand.u32 %s75, 1
        %s465 = scalar_lea.sflag [#allocation4], %s464
        %s466 = sand.u32 %s75, 1
        %s467 = smul.addr %s466, 64
        %s468 = scalar_lea.vmem [#allocation7], %s467
        // Predicated region
        $region37: #{discriminator_forward.5} parent=27 // pred_check
          %p469 = pneg %p85
        $region38: #{discriminator_forward.5} parent=27 // pred_check_branch
          %471 = sbr.rel (%p469) target = $region40
        $region39: #{discriminator_forward.5} parent=27 // pred_region
          %s473 = ssub.s32 1024, 1024
          %474 = vsyncadd %s465, %s473
          %s475 = smul.addr %s20, 8
          %s476 = smul.addr %s475, 128
          %s477 = scalar_lea.hbm %s2, %s476
          %s478 = sshll.u32 %s468, 4
          %s479 = int_to_ptr.vmem [resolvable:$true] %s478
          %484 = dma.vmem_to_hbm [thread:$0]  %s479, 1024, %s477, %s465, 128, 128, 8
        $region40: #{discriminator_forward.5} parent=27 // pred_fallthru
          _
      $region28: #{discriminator_forward.5} parent=5 // pred_fallthru
        _
      %p485 = scmp.le.s32.totalorder 2, %s15
      // Predicated region
      $region41: #{discriminator_forward.5} parent=5 // pred_check
        %p486 = pneg %p485
      $region42: #{discriminator_forward.5} parent=5 // pred_check_branch
        %488 = sbr.rel (%p486) target = $region44
      $region43: #{discriminator_forward.5} parent=5 // pred_region
        %s489 = ssub.s32 %s15, 2
        // Predicated region
        $region45: #{discriminator_forward.5} parent=43 // pred_check
          %p490 = pneg %p91
        $region46: #{discriminator_forward.5} parent=43 // pred_check_branch
          %492 = sbr.rel (%p490) target = $region48
        $region47: #{discriminator_forward.5} parent=43 // pred_region
          %s493 = sand.u32 %s76, 1
          %s494 = scalar_lea.sflag [#allocation4], %s493
          %s495 = sand.u32 %s76, 1
          %s496 = smul.addr %s495, 64
          %s497 = scalar_lea.vmem [#allocation7], %s496
          %498 = dma.done %s494, 1024
        $region48: #{discriminator_forward.5} parent=43 // pred_fallthru
          _
      $region44: #{discriminator_forward.5} parent=5 // pred_fallthru
        _
    $region6: #{discriminator_forward.5} parent=1 // loop_footer
      %s19 = sadd.s32 1, %s15
    $region7: #{discriminator_forward.5} parent=1 // loop_footer_branch
      %14 = sbr.rel target = $region3
    $region8: #{discriminator_forward.5} parent=1 // loop_exit
      _
    %499 = vsyncpa [#allocation3], 1
    %s500 = scalar_lea.sflag [#allocation3], 1
    %501 = vsyncpa %s500, 1
    %502 = vsyncpa [#allocation6], 1
    %503 = vsyncpa [#allocation4], 1
    %s504 = scalar_lea.sflag [#allocation4], 1
    %505 = vsyncpa %s504, 1

// kernel: discriminator_forward.6
$region0: #{discriminator_forward.6}
  #allocation0 [shape = 'u32[]', space=smem, size = 0x4, offset = 0x4, fixed_abs, tag = 'smem constant byte address 0x4 - core index']
  #allocation1 [shape = 'u32[144,128]{1,0:T(1,128)}', space=vmem, size = 0x12000, scoped, tag = 'internal scratch']
  %s0 = inlined_call_operand.hbm [shape: f32[2,20,64], index: 0, kind: input, shape index: {}]
  %s1 = inlined_call_operand.hbm [shape: f32[2,64,16], index: 1, kind: input, shape index: {}]
  %s2 = inlined_call_operand.hbm [shape: f32[2,16,16], index: 2, kind: output, shape index: {}]
  %s3 = sld [smem:[#allocation0]]
  $region49: #{discriminator_forward.6} parent=0
    _
  %s5 = ssub.s32 1, %s3
  %s6 = scalar_select 0, %s5, %s3
  $region1: #{discriminator_forward.6} parent=0
    #allocation2 [shape = 'u8[24576]{0}', space=vmem, size = 0x6000, scoped, tag = 'input window, operand 0']
    #allocation3 [shape = 's32[2]{0}', space=sflag, size = 0x8, scoped, tag = 'scoped memory for discriminator_forward.6']
    #allocation4 [shape = 's32[2]{0}', space=sflag, size = 0x8, scoped, tag = 'scoped memory for discriminator_forward.6']
    #allocation5 [shape = 'u8[65536]{0}', space=vmem, size = 0x10000, scoped, tag = 'input window, operand 1, single buffered']
    #allocation6 [shape = 's32[1]{0}', space=sflag, size = 0x4, scoped, tag = 'scoped memory for discriminator_forward.6']
    #allocation7 [shape = 'u8[16384]{0}', space=vmem, size = 0x4000, scoped, tag = 'output window, operand 0']
    %7 = vsyncpa [#allocation3], 0
    %s8 = scalar_lea.sflag [#allocation3], 1
    %9 = vsyncpa %s8, 0
    %10 = vsyncpa [#allocation6], 0
    %11 = vsyncpa [#allocation4], 0
    %s12 = scalar_lea.sflag [#allocation4], 1
    %13 = vsyncpa %s12, 0
    loop: start=0, step=1, limit=4
    $region2: #{discriminator_forward.6} parent=1 // loop_pre_header
      _
    $region3: #{discriminator_forward.6} parent=1 // loop_header
      %s15 = sphi 0, %s19
      %p16 = scmp.ge.s32.totalorder %s15, 4
      %s25 = sphi 0, %s27
      %s28 = sphi 0, %s25
      %s29 = sphi 0, %s28
      %s45 = sphi 0, %s29
      %s49 = sphi 0, %s49
      %s51 = sphi 0, %s49
      %s52 = sphi 0, %s51
      %s66 = sphi 0, %s52
      %s72 = sphi 0, %s74
      %s75 = sphi 0, %s72
      %s76 = sphi 0, %s75
      %s92 = sphi 0, %s76
    $region4: #{discriminator_forward.6} parent=1 // loop_header_branch
      %18 = sbr.rel (%p16) target = $region8
    $region5: #{discriminator_forward.6} parent=1 // loop_body
      %s20 = ssub.s32 %s15, 1
      %s21 = ssub.s32 %s15, 2
      %s22 = sadd.s32 %s15, 1
      %s23 = ssub.s32 %s15, %s22
      %p24 = scmp.eq.s32.totalorder %s23, 0
      %s26 = sadd.s32 %s25, 1
      %s27 = scalar_select %p24, %s25, %s26
      %p30 = pneg %p24
      %p31 = scmp.eq.s32.totalorder %s15, 1
      %p32 = por %p30, %p31
      %p33 = scmp.ne.s32.totalorder %s25, %s28
      %p34 = scmp.eq.s32.totalorder %s15, 0
      %p35 = por %p33, %p34
      %p36 = scmp.ne.s32.totalorder %s25, %s28
      %p37 = scmp.eq.s32.totalorder %s20, 1
      %p38 = por %p36, %p37
      %p39 = scmp.ne.s32.totalorder %s28, %s29
      %p40 = scmp.eq.s32.totalorder %s20, 0
      %p41 = por %p39, %p40
      %p42 = scmp.ne.s32.totalorder %s28, %s29
      %p43 = scmp.eq.s32.totalorder %s21, 1
      %p44 = por %p42, %p43
      %p46 = scmp.ne.s32.totalorder %s29, %s45
      %p47 = scmp.eq.s32.totalorder %s21, 0
      %p48 = por %p46, %p47
      %s50 = sadd.s32 %s49, 1
      %p53 = scmp.eq.s32.totalorder %s15, 1
      %p54 = scmp.ne.s32.totalorder %s49, %s51
      %p55 = scmp.eq.s32.totalorder %s15, 0
      %p56 = por %p54, %p55
      %p57 = scmp.ne.s32.totalorder %s49, %s51
      %p58 = scmp.eq.s32.totalorder %s20, 1
      %p59 = por %p57, %p58
      %p60 = scmp.ne.s32.totalorder %s51, %s52
      %p61 = scmp.eq.s32.totalorder %s20, 0
      %p62 = por %p60, %p61
      %p63 = scmp.ne.s32.totalorder %s51, %s52
      %p64 = scmp.eq.s32.totalorder %s21, 1
      %p65 = por %p63, %p64
      %p67 = scmp.ne.s32.totalorder %s52, %s66
      %p68 = scmp.eq.s32.totalorder %s21, 0
      %p69 = por %p67, %p68
      %s70 = ssub.s32 %s15, %s22
      %p71 = scmp.eq.s32.totalorder %s70, 0
      %s73 = sadd.s32 %s72, 1
      %s74 = scalar_select %p71, %s72, %s73
      %p77 = pneg %p71
      %p78 = scmp.eq.s32.totalorder %s15, 1
      %p79 = por %p77, %p78
      %p80 = scmp.ne.s32.totalorder %s72, %s75
      %p81 = scmp.eq.s32.totalorder %s15, 0
      %p82 = por %p80, %p81
      %p83 = scmp.ne.s32.totalorder %s72, %s75
      %p84 = scmp.eq.s32.totalorder %s20, 1
      %p85 = por %p83, %p84
      %p86 = scmp.ne.s32.totalorder %s75, %s76
      %p87 = scmp.eq.s32.totalorder %s20, 0
      %p88 = por %p86, %p87
      %p89 = scmp.ne.s32.totalorder %s75, %s76
      %p90 = scmp.eq.s32.totalorder %s21, 1
      %p91 = por %p89, %p90
      %p93 = scmp.ne.s32.totalorder %s76, %s92
      %p94 = scmp.eq.s32.totalorder %s21, 0
      %p95 = por %p93, %p94
      %p96 = scmp.le.s32.totalorder 1, %s15
      %p97 = scmp.lt.s32.totalorder %s15, 3
      %p98 = pnand %p96, %p97
      %p99 = pneg %p98
      // Predicated region
      $region9: #{discriminator_forward.6} parent=5 // pred_check
        _
      $region10: #{discriminator_forward.6} parent=5 // pred_check_branch
        %101 = sbr.rel (%p98) target = $region12
      $region11: #{discriminator_forward.6} parent=5 // pred_region
        %s102 = ssub.s32 %s15, 1
        // Predicated region
        $region13: #{discriminator_forward.6} parent=11 // pred_check
          %p103 = pneg %p62
        $region14: #{discriminator_forward.6} parent=11 // pred_check_branch
          %105 = sbr.rel (%p103) target = $region16
        $region15: #{discriminator_forward.6} parent=11 // pred_region
          %s107 = ssub.s32 2048, 2048
          %108 = vsyncadd [#allocation6], %s107
          %s109 = sshll.u32 [#allocation5], 4
          %s110 = int_to_ptr.vmem [resolvable:$true] %s109
          %115 = dma.hbm_to_vmem [thread:$0]  %s1, 2048, %s110, [#allocation6], 128, 128, 8
        $region16: #{discriminator_forward.6} parent=11 // pred_fallthru
          _
      $region12: #{discriminator_forward.6} parent=5 // pred_fallthru
        _
      %p116 = scmp.lt.s32.totalorder %s15, 2
      // Predicated region
      $region17: #{discriminator_forward.6} parent=5 // pred_check
        %p117 = pneg %p116
      $region18: #{discriminator_forward.6} parent=5 // pred_check_branch
        %119 = sbr.rel (%p117) target = $region20
      $region19: #{discriminator_forward.6} parent=5 // pred_region
        // Predicated region
        $region21: #{discriminator_forward.6} parent=19 // pred_check
          %p120 = pneg %p35
        $region22: #{discriminator_forward.6} parent=19 // pred_check_branch
          %122 = sbr.rel (%p120) target = $region24
        $region23: #{discriminator_forward.6} parent=19 // pred_region
          %s123 = sand.u32 %s25, 1
          %s124 = scalar_lea.sflag [#allocation3], %s123
          %s125 = sand.u32 %s25, 1
          %s126 = smul.addr %s125, 24
          %s127 = scalar_lea.vmem [#allocation2], %s126
          %s129 = ssub.s32 384, 384
          %130 = vsyncadd %s124, %s129
          %s131 = smul.addr %s15, 3
          %s132 = smul.addr %s131, 128
          %s133 = scalar_lea.hbm %s0, %s132
          %s134 = sshll.u32 %s127, 4
          %s135 = int_to_ptr.vmem [resolvable:$true] %s134
          %140 = dma.hbm_to_vmem [thread:$0]  %s133, 384, %s135, %s124, 128, 128, 8
        $region24: #{discriminator_forward.6} parent=19 // pred_fallthru
          _
      $region20: #{discriminator_forward.6} parent=5 // pred_fallthru
        _
      %p141 = scmp.le.s32.totalorder 1, %s15
      %p142 = scmp.lt.s32.totalorder %s15, 3
      %p143 = pnand %p141, %p142
      %p144 = pneg %p143
      // Predicated region
      $region25: #{discriminator_forward.6} parent=5 // pred_check
        _
      $region26: #{discriminator_forward.6} parent=5 // pred_check_branch
        %146 = sbr.rel (%p143) target = $region28
      $region27: #{discriminator_forward.6} parent=5 // pred_region
        %s147 = ssub.s32 %s15, 1
        %s148 = sand.u32 %s28, 1
        %s149 = scalar_lea.sflag [#allocation3], %s148
        %s150 = sand.u32 %s28, 1
        %s151 = smul.addr %s150, 24
        %s152 = scalar_lea.vmem [#allocation2], %s151
        // Predicated region
        $region29: #{discriminator_forward.6} parent=27 // pred_check
          %p153 = pneg %p41
        $region30: #{discriminator_forward.6} parent=27 // pred_check_branch
          %155 = sbr.rel (%p153) target = $region32
        $region31: #{discriminator_forward.6} parent=27 // pred_region
          %156 = dma.done %s149, 384
        $region32: #{discriminator_forward.6} parent=27 // pred_fallthru
          _
        // Predicated region
        $region33: #{discriminator_forward.6} parent=27 // pred_check
          %p157 = pneg %p62
        $region34: #{discriminator_forward.6} parent=27 // pred_check_branch
          %159 = sbr.rel (%p157) target = $region36
        $region35: #{discriminator_forward.6} parent=27 // pred_region
          %160 = dma.done [#allocation6], 2048
        $region36: #{discriminator_forward.6} parent=27 // pred_fallthru
          _
        %s161 = sand.u32 %s28, 1
        %s162 = scalar_lea.sflag [#allocation3], %s161
        %s163 = sand.u32 %s28, 1
        %s164 = smul.addr %s163, 24
        %s165 = scalar_lea.vmem [#allocation2], %s164
        %p166 = pneg %p41
        %p167 = pneg %p38
        %p168 = pneg %p62
        %p169 = pneg %p59
        %p170 = pneg %p88
        %p171 = pneg %p85
        %s172 = sand.u32 %s75, 1
        %s173 = scalar_lea.sflag [#allocation4], %s172
        %s174 = sand.u32 %s75, 1
        %s175 = smul.addr %s174, 16
        %s176 = scalar_lea.vmem [#allocation7], %s175
        %v177 = vld [vmem:[%s152] sm:$0xff]
        %v178 = vld [vmem:[%s152 + $0x8] sm:$0xff]
        %v179 = vld [vmem:[%s152 + $0x4] sm:$0xff]
        %v180 = vld [vmem:[%s152 + $0xc] sm:$0xff]
        %v181 = vld [vmem:[#allocation5] sm:$0xff]
        %v182 = vld [vmem:[#allocation5 + $0x8] sm:$0xff]
        %v183 = vld [vmem:[#allocation5 + $0x10] sm:$0xff]
        %v184 = vld [vmem:[#allocation5 + $0x18] sm:$0xff]
        %v185 = vld [vmem:[#allocation5 + $0x20] sm:$0xff]
        %v186 = vld [vmem:[#allocation5 + $0x28] sm:$0xff]
        %v187 = vld [vmem:[#allocation5 + $0x30] sm:$0xff]
        %v188 = vld [vmem:[#allocation5 + $0x38] sm:$0xff]
        %s189 = scalar_lea.vmem [#allocation5], 64
        %v190 = vld [vmem:[%s189] sm:$0xff]
        %v191 = vld [vmem:[%s189 + $0x8] sm:$0xff]
        %v192 = vld [vmem:[%s189 + $0x10] sm:$0xff]
        %v193 = vld [vmem:[%s189 + $0x18] sm:$0xff]
        %v194 = vld [vmem:[%s189 + $0x20] sm:$0xff]
        %v195 = vld [vmem:[%s189 + $0x28] sm:$0xff]
        %v196 = vld [vmem:[%s189 + $0x30] sm:$0xff]
        %v197 = vld [vmem:[%s189 + $0x38] sm:$0xff]
        %vm198 = vcmask 523264
        %v200 = vsel %vm198, %v179, 0
        %v203 = vsel %vm198, %v180, 0
        %205 = vmatprep.subr.mxu0 0.0
        %206 = vmatpush1.msra.mxu0 %v190
        %207 = vmatprep.subr.mxu0 0.0
        %208 = vmatpush1.msra.mxu0 %v191
        %209 = vmatprep.subr.mxu0 0.0
        %210 = vmatpush1.msra.mxu0 %v192
        %211 = vmatprep.subr.mxu0 0.0
        %212 = vmatpush1.msra.mxu0 %v193
        %213 = vmatprep.subr.mxu0 0.0
        %214 = vmatpush1.msra.mxu0 %v194
        %215 = vmatprep.subr.mxu0 0.0
        %216 = vmatpush1.msra.mxu0 %v195
        %217 = vmatprep.subr.mxu0 0.0
        %218 = vmatpush1.msra.mxu0 %v196
        %219 = vmatprep.subr.mxu0 0.0
        %220 = vmatpush1.msra.mxu0 %v197
        %221 = vmatprep.subr.mxu0 0.0
        %222 = vmatpush1.msra.mxu0 0.0
        %223 = vmatprep.subr.mxu0 0.0
        %224 = vmatpush1.msra.mxu0 0.0
        %225 = vmatprep.subr.mxu0 0.0
        %226 = vmatpush1.msra.mxu0 0.0
        %227 = vmatprep.subr.mxu0 0.0
        %228 = vmatpush1.msra.mxu0 0.0
        %229 = vmatprep.subr.mxu0 0.0
        %230 = vmatpush1.msra.mxu0 0.0
        %231 = vmatprep.subr.mxu0 0.0
        %232 = vmatpush1.msra.mxu0 0.0
        %233 = vmatprep.subr.mxu0 0.0
        %234 = vmatpush1.msra.mxu0 0.0
        %235 = vmatprep.subr.mxu0 0.0
        %236 = vmatpush1.msra.mxu0 0.0
        %237 = vmatprep.subr.mxu0 0.0
        %238 = vmatpush1.msra.mxu0 0.0
        %239 = vmatprep.subr.mxu0 0.0
        %240 = vmatpush1.msra.mxu0 0.0
        %241 = vmatprep.subr.mxu0 0.0
        %242 = vmatpush1.msra.mxu0 0.0
        %243 = vmatprep.subr.mxu0 0.0
        %244 = vmatpush1.msra.mxu0 0.0
        %245 = vmatprep.subr.mxu0 0.0
        %246 = vmatpush1.msra.mxu0 0.0
        %247 = vmatprep.subr.mxu0 0.0
        %248 = vmatpush1.msra.mxu0 0.0
        %249 = vmatprep.subr.mxu0 0.0
        %250 = vmatpush1.msra.mxu0 0.0
        %251 = vmatprep.subr.mxu0 0.0
        %252 = vmatpush1.msra.mxu0 0.0
        %253 = vmatprep.subr.mxu0 0.0
        %254 = vmatpush1.msra.mxu0 0.0
        %255 = vmatprep.subr.mxu0 0.0
        %256 = vmatpush1.msra.mxu0 0.0
        %257 = vmatprep.subr.mxu0 0.0
        %258 = vmatpush1.msra.mxu0 0.0
        %259 = vmatprep.subr.mxu0 0.0
        %260 = vmatpush1.msra.mxu0 0.0
        %261 = vmatprep.subr.mxu0 0.0
        %262 = vmatpush1.msra.mxu0 0.0
        %263 = vmatprep.subr.mxu0 0.0
        %264 = vmatpush1.msra.mxu0 0.0
        %265 = vmatprep.subr.mxu0 0.0
        %266 = vmatpush1.msra.mxu0 0.0
        %267 = vmatprep.subr.mxu0 0.0
        %268 = vmatpush1.msra.mxu0 0.0
        %269 = vmatprep.mubr.f32.mxu0 0.0
        %270 = vmatmul.mubr.f32.gmra.mrb[0].mxu0 %v200
        %v271 = vpop.f32.mrb[0].mxu0
        %v272 = vadd.f32 0.0, %v271
        %v273 = vpop.f32.mrb[0].mxu0
        %274 = vmatprep.mubr.f32.mxu0 0.0
        %275 = vmatmul.mubr.f32.gmra.mrb[0].mxu0 %v203
        %v276 = vpop.f32.mrb[0].mxu0
        %v277 = vadd.f32 0.0, %v276
        %v278 = vpop.f32.mrb[0].mxu0
        %279 = vdwg.mxu0
        %v281 = vsel %vm198, %v177, 0
        %v284 = vsel %vm198, %v178, 0
        %286 = vmatprep.subr.mxu0 0.0
        %287 = vmatpush1.msra.mxu0 %v181
        %288 = vmatprep.subr.mxu0 0.0
        %289 = vmatpush1.msra.mxu0 %v182
        %290 = vmatprep.subr.mxu0 0.0
        %291 = vmatpush1.msra.mxu0 %v183
        %292 = vmatprep.subr.mxu0 0.0
        %293 = vmatpush1.msra.mxu0 %v184
        %294 = vmatprep.subr.mxu0 0.0
        %295 = vmatpush1.msra.mxu0 %v185
        %296 = vmatprep.subr.mxu0 0.0
        %297 = vmatpush1.msra.mxu0 %v186
        %298 = vmatprep.subr.mxu0 0.0
        %299 = vmatpush1.msra.mxu0 %v187
        %300 = vmatprep.subr.mxu0 0.0
        %301 = vmatpush1.msra.mxu0 %v188
        %302 = vmatprep.subr.mxu0 0.0
        %303 = vmatpush1.msra.mxu0 0.0
        %304 = vmatprep.subr.mxu0 0.0
        %305 = vmatpush1.msra.mxu0 0.0
        %306 = vmatprep.subr.mxu0 0.0
        %307 = vmatpush1.msra.mxu0 0.0
        %308 = vmatprep.subr.mxu0 0.0
        %309 = vmatpush1.msra.mxu0 0.0
        %310 = vmatprep.subr.mxu0 0.0
        %311 = vmatpush1.msra.mxu0 0.0
        %312 = vmatprep.subr.mxu0 0.0
        %313 = vmatpush1.msra.mxu0 0.0
        %314 = vmatprep.subr.mxu0 0.0
        %315 = vmatpush1.msra.mxu0 0.0
        %316 = vmatprep.subr.mxu0 0.0
        %317 = vmatpush1.msra.mxu0 0.0
        %318 = vmatprep.subr.mxu0 0.0
        %319 = vmatpush1.msra.mxu0 0.0
        %320 = vmatprep.subr.mxu0 0.0
        %321 = vmatpush1.msra.mxu0 0.0
        %322 = vmatprep.subr.mxu0 0.0
        %323 = vmatpush1.msra.mxu0 0.0
        %324 = vmatprep.subr.mxu0 0.0
        %325 = vmatpush1.msra.mxu0 0.0
        %326 = vmatprep.subr.mxu0 0.0
        %327 = vmatpush1.msra.mxu0 0.0
        %328 = vmatprep.subr.mxu0 0.0
        %329 = vmatpush1.msra.mxu0 0.0
        %330 = vmatprep.subr.mxu0 0.0
        %331 = vmatpush1.msra.mxu0 0.0
        %332 = vmatprep.subr.mxu0 0.0
        %333 = vmatpush1.msra.mxu0 0.0
        %334 = vmatprep.subr.mxu0 0.0
        %335 = vmatpush1.msra.mxu0 0.0
        %336 = vmatprep.subr.mxu0 0.0
        %337 = vmatpush1.msra.mxu0 0.0
        %338 = vmatprep.subr.mxu0 0.0
        %339 = vmatpush1.msra.mxu0 0.0
        %340 = vmatprep.subr.mxu0 0.0
        %341 = vmatpush1.msra.mxu0 0.0
        %342 = vmatprep.subr.mxu0 0.0
        %343 = vmatpush1.msra.mxu0 0.0
        %344 = vmatprep.subr.mxu0 0.0
        %345 = vmatpush1.msra.mxu0 0.0
        %346 = vmatprep.subr.mxu0 0.0
        %347 = vmatpush1.msra.mxu0 0.0
        %348 = vmatprep.subr.mxu0 0.0
        %349 = vmatpush1.msra.mxu0 0.0
        %350 = vmatprep.mubr.f32.mxu0 0.0
        %351 = vmatmul.mubr.f32.gmra.mrb[0].mxu0 %v281
        %v352 = vpop.f32.mrb[0].mxu0
        %v353 = vadd.f32 %v272, %v352
        %v354 = vpop.f32.mrb[0].mxu0
        %355 = vmatprep.mubr.f32.mxu0 0.0
        %356 = vmatmul.mubr.f32.gmra.mrb[0].mxu0 %v284
        %v357 = vpop.f32.mrb[0].mxu0
        %v358 = vadd.f32 %v277, %v357
        %v359 = vpop.f32.mrb[0].mxu0
        %360 = vdwg.mxu0
        %vm361 = vcmp.ge.f32.partialorder %v353, 0.0
        %vm362 = vcmp.ge.f32.partialorder %v358, 0.0
        %v363 = vmul.f32 %v353, 0.2
        %v364 = vmul.f32 %v358, 0.2
        %v365 = vsel %vm361, %v353, %v363
        %v366 = vsel %vm362, %v358, %v364
        %vm367 = vcmask 130048
        %368 = vst.msk [vmem:[%s176] sm:$0xff] %vm367, %v365
        %369 = vst.msk [vmem:[%s176 + $0x8] sm:$0xff] %vm367, %v366
        %s370 = sand.u32 %s75, 1
        %s371 = scalar_lea.sflag [#allocation4], %s370
        %s372 = sand.u32 %s75, 1
        %s373 = smul.addr %s372, 16
        %s374 = scalar_lea.vmem [#allocation7], %s373
        // Predicated region
        $region37: #{discriminator_forward.6} parent=27 // pred_check
          %p375 = pneg %p85
        $region38: #{discriminator_forward.6} parent=27 // pred_check_branch
          %377 = sbr.rel (%p375) target = $region40
        $region39: #{discriminator_forward.6} parent=27 // pred_region
          %s379 = ssub.s32 256, 256
          %380 = vsyncadd %s371, %s379
          %s381 = smul.addr %s20, 2
          %s382 = smul.addr %s381, 128
          %s383 = scalar_lea.hbm %s2, %s382
          %s384 = sshll.u32 %s374, 4
          %s385 = int_to_ptr.vmem [resolvable:$true] %s384
          %390 = dma.vmem_to_hbm [thread:$0]  %s385, 256, %s383, %s371, 128, 128, 8
        $region40: #{discriminator_forward.6} parent=27 // pred_fallthru
          _
      $region28: #{discriminator_forward.6} parent=5 // pred_fallthru
        _
      %p391 = scmp.le.s32.totalorder 2, %s15
      // Predicated region
      $region41: #{discriminator_forward.6} parent=5 // pred_check
        %p392 = pneg %p391
      $region42: #{discriminator_forward.6} parent=5 // pred_check_branch
        %394 = sbr.rel (%p392) target = $region44
      $region43: #{discriminator_forward.6} parent=5 // pred_region
        %s395 = ssub.s32 %s15, 2
        // Predicated region
        $region45: #{discriminator_forward.6} parent=43 // pred_check
          %p396 = pneg %p91
        $region46: #{discriminator_forward.6} parent=43 // pred_check_branch
          %398 = sbr.rel (%p396) target = $region48
        $region47: #{discriminator_forward.6} parent=43 // pred_region
          %s399 = sand.u32 %s76, 1
          %s400 = scalar_lea.sflag [#allocation4], %s399
          %s401 = sand.u32 %s76, 1
          %s402 = smul.addr %s401, 16
          %s403 = scalar_lea.vmem [#allocation7], %s402
          %404 = dma.done %s400, 256
        $region48: #{discriminator_forward.6} parent=43 // pred_fallthru
          _
      $region44: #{discriminator_forward.6} parent=5 // pred_fallthru
        _
    $region6: #{discriminator_forward.6} parent=1 // loop_footer
      %s19 = sadd.s32 1, %s15
    $region7: #{discriminator_forward.6} parent=1 // loop_footer_branch
      %14 = sbr.rel target = $region3
    $region8: #{discriminator_forward.6} parent=1 // loop_exit
      _
    %405 = vsyncpa [#allocation3], 1
    %s406 = scalar_lea.sflag [#allocation3], 1
    %407 = vsyncpa %s406, 1
    %408 = vsyncpa [#allocation6], 1
    %409 = vsyncpa [#allocation4], 1
    %s410 = scalar_lea.sflag [#allocation4], 1
    %411 = vsyncpa %s410, 1

// kernel: discriminator_forward.7
$region0: #{discriminator_forward.7}
  #allocation0 [shape = 'u32[]', space=smem, size = 0x4, offset = 0x4, fixed_abs, tag = 'smem constant byte address 0x4 - core index']
  #allocation1 [shape = 'u32[144,128]{1,0:T(1,128)}', space=vmem, size = 0x12000, scoped, tag = 'internal scratch']
  %s0 = inlined_call_operand.hbm [shape: f32[2,20,24], index: 0, kind: input, shape index: {}]
  %s1 = inlined_call_operand.hbm [shape: f32[2,24,8], index: 1, kind: input, shape index: {}]
  %s2 = inlined_call_operand.hbm [shape: f32[2,16,8], index: 2, kind: output, shape index: {}]
  %s3 = sld [smem:[#allocation0]]
  $region49: #{discriminator_forward.7} parent=0
    _
  %s5 = ssub.s32 1, %s3
  %s6 = scalar_select 0, %s5, %s3
  $region1: #{discriminator_forward.7} parent=0
    #allocation2 [shape = 'u8[24576]{0}', space=vmem, size = 0x6000, scoped, tag = 'input window, operand 0']
    #allocation3 [shape = 's32[2]{0}', space=sflag, size = 0x8, scoped, tag = 'scoped memory for discriminator_forward.7']
    #allocation4 [shape = 's32[2]{0}', space=sflag, size = 0x8, scoped, tag = 'scoped memory for discriminator_forward.7']
    #allocation5 [shape = 'u8[24576]{0}', space=vmem, size = 0x6000, scoped, tag = 'input window, operand 1, single buffered']
    #allocation6 [shape = 's32[1]{0}', space=sflag, size = 0x4, scoped, tag = 'scoped memory for discriminator_forward.7']
    #allocation7 [shape = 'u8[16384]{0}', space=vmem, size = 0x4000, scoped, tag = 'output window, operand 0']
    %7 = vsyncpa [#allocation3], 0
    %s8 = scalar_lea.sflag [#allocation3], 1
    %9 = vsyncpa %s8, 0
    %10 = vsyncpa [#allocation6], 0
    %11 = vsyncpa [#allocation4], 0
    %s12 = scalar_lea.sflag [#allocation4], 1
    %13 = vsyncpa %s12, 0
    loop: start=0, step=1, limit=4
    $region2: #{discriminator_forward.7} parent=1 // loop_pre_header
      _
    $region3: #{discriminator_forward.7} parent=1 // loop_header
      %s15 = sphi 0, %s19
      %p16 = scmp.ge.s32.totalorder %s15, 4
      %s25 = sphi 0, %s27
      %s28 = sphi 0, %s25
      %s29 = sphi 0, %s28
      %s45 = sphi 0, %s29
      %s49 = sphi 0, %s49
      %s51 = sphi 0, %s49
      %s52 = sphi 0, %s51
      %s66 = sphi 0, %s52
      %s72 = sphi 0, %s74
      %s75 = sphi 0, %s72
      %s76 = sphi 0, %s75
      %s92 = sphi 0, %s76
    $region4: #{discriminator_forward.7} parent=1 // loop_header_branch
      %18 = sbr.rel (%p16) target = $region8
    $region5: #{discriminator_forward.7} parent=1 // loop_body
      %s20 = ssub.s32 %s15, 1
      %s21 = ssub.s32 %s15, 2
      %s22 = sadd.s32 %s15, 1
      %s23 = ssub.s32 %s15, %s22
      %p24 = scmp.eq.s32.totalorder %s23, 0
      %s26 = sadd.s32 %s25, 1
      %s27 = scalar_select %p24, %s25, %s26
      %p30 = pneg %p24
      %p31 = scmp.eq.s32.totalorder %s15, 1
      %p32 = por %p30, %p31
      %p33 = scmp.ne.s32.totalorder %s25, %s28
      %p34 = scmp.eq.s32.totalorder %s15, 0
      %p35 = por %p33, %p34
      %p36 = scmp.ne.s32.totalorder %s25, %s28
      %p37 = scmp.eq.s32.totalorder %s20, 1
      %p38 = por %p36, %p37
      %p39 = scmp.ne.s32.totalorder %s28, %s29
      %p40 = scmp.eq.s32.totalorder %s20, 0
      %p41 = por %p39, %p40
      %p42 = scmp.ne.s32.totalorder %s28, %s29
      %p43 = scmp.eq.s32.totalorder %s21, 1
      %p44 = por %p42, %p43
      %p46 = scmp.ne.s32.totalorder %s29, %s45
      %p47 = scmp.eq.s32.totalorder %s21, 0
      %p48 = por %p46, %p47
      %s50 = sadd.s32 %s49, 1
      %p53 = scmp.eq.s32.totalorder %s15, 1
      %p54 = scmp.ne.s32.totalorder %s49, %s51
      %p55 = scmp.eq.s32.totalorder %s15, 0
      %p56 = por %p54, %p55
      %p57 = scmp.ne.s32.totalorder %s49, %s51
      %p58 = scmp.eq.s32.totalorder %s20, 1
      %p59 = por %p57, %p58
      %p60 = scmp.ne.s32.totalorder %s51, %s52
      %p61 = scmp.eq.s32.totalorder %s20, 0
      %p62 = por %p60, %p61
      %p63 = scmp.ne.s32.totalorder %s51, %s52
      %p64 = scmp.eq.s32.totalorder %s21, 1
      %p65 = por %p63, %p64
      %p67 = scmp.ne.s32.totalorder %s52, %s66
      %p68 = scmp.eq.s32.totalorder %s21, 0
      %p69 = por %p67, %p68
      %s70 = ssub.s32 %s15, %s22
      %p71 = scmp.eq.s32.totalorder %s70, 0
      %s73 = sadd.s32 %s72, 1
      %s74 = scalar_select %p71, %s72, %s73
      %p77 = pneg %p71
      %p78 = scmp.eq.s32.totalorder %s15, 1
      %p79 = por %p77, %p78
      %p80 = scmp.ne.s32.totalorder %s72, %s75
      %p81 = scmp.eq.s32.totalorder %s15, 0
      %p82 = por %p80, %p81
      %p83 = scmp.ne.s32.totalorder %s72, %s75
      %p84 = scmp.eq.s32.totalorder %s20, 1
      %p85 = por %p83, %p84
      %p86 = scmp.ne.s32.totalorder %s75, %s76
      %p87 = scmp.eq.s32.totalorder %s20, 0
      %p88 = por %p86, %p87
      %p89 = scmp.ne.s32.totalorder %s75, %s76
      %p90 = scmp.eq.s32.totalorder %s21, 1
      %p91 = por %p89, %p90
      %p93 = scmp.ne.s32.totalorder %s76, %s92
      %p94 = scmp.eq.s32.totalorder %s21, 0
      %p95 = por %p93, %p94
      %p96 = scmp.le.s32.totalorder 1, %s15
      %p97 = scmp.lt.s32.totalorder %s15, 3
      %p98 = pnand %p96, %p97
      %p99 = pneg %p98
      // Predicated region
      $region9: #{discriminator_forward.7} parent=5 // pred_check
        _
      $region10: #{discriminator_forward.7} parent=5 // pred_check_branch
        %101 = sbr.rel (%p98) target = $region12
      $region11: #{discriminator_forward.7} parent=5 // pred_region
        %s102 = ssub.s32 %s15, 1
        // Predicated region
        $region13: #{discriminator_forward.7} parent=11 // pred_check
          %p103 = pneg %p62
        $region14: #{discriminator_forward.7} parent=11 // pred_check_branch
          %105 = sbr.rel (%p103) target = $region16
        $region15: #{discriminator_forward.7} parent=11 // pred_region
          %s107 = ssub.s32 768, 768
          %108 = vsyncadd [#allocation6], %s107
          %s109 = sshll.u32 [#allocation5], 4
          %s110 = int_to_ptr.vmem [resolvable:$true] %s109
          %115 = dma.hbm_to_vmem [thread:$0]  %s1, 768, %s110, [#allocation6], 128, 128, 8
        $region16: #{discriminator_forward.7} parent=11 // pred_fallthru
          _
      $region12: #{discriminator_forward.7} parent=5 // pred_fallthru
        _
      %p116 = scmp.lt.s32.totalorder %s15, 2
      // Predicated region
      $region17: #{discriminator_forward.7} parent=5 // pred_check
        %p117 = pneg %p116
      $region18: #{discriminator_forward.7} parent=5 // pred_check_branch
        %119 = sbr.rel (%p117) target = $region20
      $region19: #{discriminator_forward.7} parent=5 // pred_region
        // Predicated region
        $region21: #{discriminator_forward.7} parent=19 // pred_check
          %p120 = pneg %p35
        $region22: #{discriminator_forward.7} parent=19 // pred_check_branch
          %122 = sbr.rel (%p120) target = $region24
        $region23: #{discriminator_forward.7} parent=19 // pred_region
          %s123 = sand.u32 %s25, 1
          %s124 = scalar_lea.sflag [#allocation3], %s123
          %s125 = sand.u32 %s25, 1
          %s126 = smul.addr %s125, 24
          %s127 = scalar_lea.vmem [#allocation2], %s126
          %s129 = ssub.s32 384, 384
          %130 = vsyncadd %s124, %s129
          %s131 = smul.addr %s15, 3
          %s132 = smul.addr %s131, 128
          %s133 = scalar_lea.hbm %s0, %s132
          %s134 = sshll.u32 %s127, 4
          %s135 = int_to_ptr.vmem [resolvable:$true] %s134
          %140 = dma.hbm_to_vmem [thread:$0]  %s133, 384, %s135, %s124, 128, 128, 8
        $region24: #{discriminator_forward.7} parent=19 // pred_fallthru
          _
      $region20: #{discriminator_forward.7} parent=5 // pred_fallthru
        _
      %p141 = scmp.le.s32.totalorder 1, %s15
      %p142 = scmp.lt.s32.totalorder %s15, 3
      %p143 = pnand %p141, %p142
      %p144 = pneg %p143
      // Predicated region
      $region25: #{discriminator_forward.7} parent=5 // pred_check
        _
      $region26: #{discriminator_forward.7} parent=5 // pred_check_branch
        %146 = sbr.rel (%p143) target = $region28
      $region27: #{discriminator_forward.7} parent=5 // pred_region
        %s147 = ssub.s32 %s15, 1
        %s148 = sand.u32 %s28, 1
        %s149 = scalar_lea.sflag [#allocation3], %s148
        %s150 = sand.u32 %s28, 1
        %s151 = smul.addr %s150, 24
        %s152 = scalar_lea.vmem [#allocation2], %s151
        // Predicated region
        $region29: #{discriminator_forward.7} parent=27 // pred_check
          %p153 = pneg %p41
        $region30: #{discriminator_forward.7} parent=27 // pred_check_branch
          %155 = sbr.rel (%p153) target = $region32
        $region31: #{discriminator_forward.7} parent=27 // pred_region
          %156 = dma.done %s149, 384
        $region32: #{discriminator_forward.7} parent=27 // pred_fallthru
          _
        // Predicated region
        $region33: #{discriminator_forward.7} parent=27 // pred_check
          %p157 = pneg %p62
        $region34: #{discriminator_forward.7} parent=27 // pred_check_branch
          %159 = sbr.rel (%p157) target = $region36
        $region35: #{discriminator_forward.7} parent=27 // pred_region
          %160 = dma.done [#allocation6], 768
        $region36: #{discriminator_forward.7} parent=27 // pred_fallthru
          _
        %s161 = sand.u32 %s28, 1
        %s162 = scalar_lea.sflag [#allocation3], %s161
        %s163 = sand.u32 %s28, 1
        %s164 = smul.addr %s163, 24
        %s165 = scalar_lea.vmem [#allocation2], %s164
        %p166 = pneg %p41
        %p167 = pneg %p38
        %p168 = pneg %p62
        %p169 = pneg %p59
        %p170 = pneg %p88
        %p171 = pneg %p85
        %s172 = sand.u32 %s75, 1
        %s173 = scalar_lea.sflag [#allocation4], %s172
        %s174 = sand.u32 %s75, 1
        %s175 = smul.addr %s174, 16
        %s176 = scalar_lea.vmem [#allocation7], %s175
        %v177 = vld [vmem:[%s152] sm:$0xff]
        %v178 = vld [vmem:[%s152 + $0x8] sm:$0xff]
        %v179 = vld [vmem:[%s152 + $0x4] sm:$0xff]
        %v180 = vld [vmem:[%s152 + $0xc] sm:$0xff]
        %v181 = vld [vmem:[#allocation5] sm:$0xff]
        %v182 = vld [vmem:[#allocation5 + $0x8] sm:$0xff]
        %v183 = vld [vmem:[#allocation5 + $0x10] sm:$0xff]
        %s184 = scalar_lea.vmem [#allocation5], 24
        %v185 = vld [vmem:[%s184] sm:$0xff]
        %v186 = vld [vmem:[%s184 + $0x8] sm:$0xff]
        %v187 = vld [vmem:[%s184 + $0x10] sm:$0xff]
        %vm188 = vcmask 195584
        %v190 = vsel %vm188, %v179, 0
        %v193 = vsel %vm188, %v180, 0
        %195 = vmatprep.subr.mxu0 0.0
        %196 = vmatpush1.msra.mxu0 %v185
        %197 = vmatprep.subr.mxu0 0.0
        %198 = vmatpush1.msra.mxu0 %v186
        %199 = vmatprep.subr.mxu0 0.0
        %200 = vmatpush1.msra.mxu0 %v187
        %201 = vmatprep.subr.mxu0 0.0
        %202 = vmatpush1.msra.mxu0 0.0
        %203 = vmatprep.subr.mxu0 0.0
        %204 = vmatpush1.msra.mxu0 0.0
        %205 = vmatprep.subr.mxu0 0.0
        %206 = vmatpush1.msra.mxu0 0.0
        %207 = vmatprep.subr.mxu0 0.0
        %208 = vmatpush1.msra.mxu0 0.0
        %209 = vmatprep.subr.mxu0 0.0
        %210 = vmatpush1.msra.mxu0 0.0
        %211 = vmatprep.subr.mxu0 0.0
        %212 = vmatpush1.msra.mxu0 0.0
        %213 = vmatprep.subr.mxu0 0.0
        %214 = vmatpush1.msra.mxu0 0.0
        %215 = vmatprep.subr.mxu0 0.0
        %216 = vmatpush1.msra.mxu0 0.0
        %217 = vmatprep.subr.mxu0 0.0
        %218 = vmatpush1.msra.mxu0 0.0
        %219 = vmatprep.subr.mxu0 0.0
        %220 = vmatpush1.msra.mxu0 0.0
        %221 = vmatprep.subr.mxu0 0.0
        %222 = vmatpush1.msra.mxu0 0.0
        %223 = vmatprep.subr.mxu0 0.0
        %224 = vmatpush1.msra.mxu0 0.0
        %225 = vmatprep.subr.mxu0 0.0
        %226 = vmatpush1.msra.mxu0 0.0
        %227 = vmatprep.subr.mxu0 0.0
        %228 = vmatpush1.msra.mxu0 0.0
        %229 = vmatprep.subr.mxu0 0.0
        %230 = vmatpush1.msra.mxu0 0.0
        %231 = vmatprep.subr.mxu0 0.0
        %232 = vmatpush1.msra.mxu0 0.0
        %233 = vmatprep.subr.mxu0 0.0
        %234 = vmatpush1.msra.mxu0 0.0
        %235 = vmatprep.subr.mxu0 0.0
        %236 = vmatpush1.msra.mxu0 0.0
        %237 = vmatprep.subr.mxu0 0.0
        %238 = vmatpush1.msra.mxu0 0.0
        %239 = vmatprep.subr.mxu0 0.0
        %240 = vmatpush1.msra.mxu0 0.0
        %241 = vmatprep.subr.mxu0 0.0
        %242 = vmatpush1.msra.mxu0 0.0
        %243 = vmatprep.subr.mxu0 0.0
        %244 = vmatpush1.msra.mxu0 0.0
        %245 = vmatprep.subr.mxu0 0.0
        %246 = vmatpush1.msra.mxu0 0.0
        %247 = vmatprep.subr.mxu0 0.0
        %248 = vmatpush1.msra.mxu0 0.0
        %249 = vmatprep.subr.mxu0 0.0
        %250 = vmatpush1.msra.mxu0 0.0
        %251 = vmatprep.subr.mxu0 0.0
        %252 = vmatpush1.msra.mxu0 0.0
        %253 = vmatprep.subr.mxu0 0.0
        %254 = vmatpush1.msra.mxu0 0.0
        %255 = vmatprep.subr.mxu0 0.0
        %256 = vmatpush1.msra.mxu0 0.0
        %257 = vmatprep.subr.mxu0 0.0
        %258 = vmatpush1.msra.mxu0 0.0
        %259 = vmatprep.mubr.f32.mxu0 0.0
        %260 = vmatmul.mubr.f32.gmra.mrb[0].mxu0 %v190
        %v261 = vpop.f32.mrb[0].mxu0
        %v262 = vadd.f32 0.0, %v261
        %v263 = vpop.f32.mrb[0].mxu0
        %264 = vmatprep.mubr.f32.mxu0 0.0
        %265 = vmatmul.mubr.f32.gmra.mrb[0].mxu0 %v193
        %v266 = vpop.f32.mrb[0].mxu0
        %v267 = vadd.f32 0.0, %v266
        %v268 = vpop.f32.mrb[0].mxu0
        %269 = vdwg.mxu0
        %v271 = vsel %vm188, %v177, 0
        %v274 = vsel %vm188, %v178, 0
        %276 = vmatprep.subr.mxu0 0.0
        %277 = vmatpush1.msra.mxu0 %v181
        %278 = vmatprep.subr.mxu0 0.0
        %279 = vmatpush1.msra.mxu0 %v182
        %280 = vmatprep.subr.mxu0 0.0
        %281 = vmatpush1.msra.mxu0 %v183
        %282 = vmatprep.subr.mxu0 0.0
        %283 = vmatpush1.msra.mxu0 0.0
        %284 = vmatprep.subr.mxu0 0.0
        %285 = vmatpush1.msra.mxu0 0.0
        %286 = vmatprep.subr.mxu0 0.0
        %287 = vmatpush1.msra.mxu0 0.0
        %288 = vmatprep.subr.mxu0 0.0
        %289 = vmatpush1.msra.mxu0 0.0
        %290 = vmatprep.subr.mxu0 0.0
        %291 = vmatpush1.msra.mxu0 0.0
        %292 = vmatprep.subr.mxu0 0.0
        %293 = vmatpush1.msra.mxu0 0.0
        %294 = vmatprep.subr.mxu0 0.0
        %295 = vmatpush1.msra.mxu0 0.0
        %296 = vmatprep.subr.mxu0 0.0
        %297 = vmatpush1.msra.mxu0 0.0
        %298 = vmatprep.subr.mxu0 0.0
        %299 = vmatpush1.msra.mxu0 0.0
        %300 = vmatprep.subr.mxu0 0.0
        %301 = vmatpush1.msra.mxu0 0.0
        %302 = vmatprep.subr.mxu0 0.0
        %303 = vmatpush1.msra.mxu0 0.0
        %304 = vmatprep.subr.mxu0 0.0
        %305 = vmatpush1.msra.mxu0 0.0
        %306 = vmatprep.subr.mxu0 0.0
        %307 = vmatpush1.msra.mxu0 0.0
        %308 = vmatprep.subr.mxu0 0.0
        %309 = vmatpush1.msra.mxu0 0.0
        %310 = vmatprep.subr.mxu0 0.0
        %311 = vmatpush1.msra.mxu0 0.0
        %312 = vmatprep.subr.mxu0 0.0
        %313 = vmatpush1.msra.mxu0 0.0
        %314 = vmatprep.subr.mxu0 0.0
        %315 = vmatpush1.msra.mxu0 0.0
        %316 = vmatprep.subr.mxu0 0.0
        %317 = vmatpush1.msra.mxu0 0.0
        %318 = vmatprep.subr.mxu0 0.0
        %319 = vmatpush1.msra.mxu0 0.0
        %320 = vmatprep.subr.mxu0 0.0
        %321 = vmatpush1.msra.mxu0 0.0
        %322 = vmatprep.subr.mxu0 0.0
        %323 = vmatpush1.msra.mxu0 0.0
        %324 = vmatprep.subr.mxu0 0.0
        %325 = vmatpush1.msra.mxu0 0.0
        %326 = vmatprep.subr.mxu0 0.0
        %327 = vmatpush1.msra.mxu0 0.0
        %328 = vmatprep.subr.mxu0 0.0
        %329 = vmatpush1.msra.mxu0 0.0
        %330 = vmatprep.subr.mxu0 0.0
        %331 = vmatpush1.msra.mxu0 0.0
        %332 = vmatprep.subr.mxu0 0.0
        %333 = vmatpush1.msra.mxu0 0.0
        %334 = vmatprep.subr.mxu0 0.0
        %335 = vmatpush1.msra.mxu0 0.0
        %336 = vmatprep.subr.mxu0 0.0
        %337 = vmatpush1.msra.mxu0 0.0
        %338 = vmatprep.subr.mxu0 0.0
        %339 = vmatpush1.msra.mxu0 0.0
        %340 = vmatprep.mubr.f32.mxu0 0.0
        %341 = vmatmul.mubr.f32.gmra.mrb[0].mxu0 %v271
        %v342 = vpop.f32.mrb[0].mxu0
        %v343 = vadd.f32 %v262, %v342
        %v344 = vpop.f32.mrb[0].mxu0
        %345 = vmatprep.mubr.f32.mxu0 0.0
        %346 = vmatmul.mubr.f32.gmra.mrb[0].mxu0 %v274
        %v347 = vpop.f32.mrb[0].mxu0
        %v348 = vadd.f32 %v267, %v347
        %v349 = vpop.f32.mrb[0].mxu0
        %350 = vdwg.mxu0
        %vm351 = vcmp.ge.f32.partialorder %v343, 0.0
        %vm352 = vcmp.ge.f32.partialorder %v348, 0.0
        %v353 = vmul.f32 %v343, 0.2
        %v354 = vmul.f32 %v348, 0.2
        %v355 = vsel %vm351, %v343, %v353
        %v356 = vsel %vm352, %v348, %v354
        %vm357 = vcmask 64512
        %358 = vst.msk [vmem:[%s176] sm:$0xff] %vm357, %v355
        %359 = vst.msk [vmem:[%s176 + $0x8] sm:$0xff] %vm357, %v356
        %s360 = sand.u32 %s75, 1
        %s361 = scalar_lea.sflag [#allocation4], %s360
        %s362 = sand.u32 %s75, 1
        %s363 = smul.addr %s362, 16
        %s364 = scalar_lea.vmem [#allocation7], %s363
        // Predicated region
        $region37: #{discriminator_forward.7} parent=27 // pred_check
          %p365 = pneg %p85
        $region38: #{discriminator_forward.7} parent=27 // pred_check_branch
          %367 = sbr.rel (%p365) target = $region40
        $region39: #{discriminator_forward.7} parent=27 // pred_region
          %s369 = ssub.s32 256, 256
          %370 = vsyncadd %s361, %s369
          %s371 = smul.addr %s20, 2
          %s372 = smul.addr %s371, 128
          %s373 = scalar_lea.hbm %s2, %s372
          %s374 = sshll.u32 %s364, 4
          %s375 = int_to_ptr.vmem [resolvable:$true] %s374
          %380 = dma.vmem_to_hbm [thread:$0]  %s375, 256, %s373, %s361, 128, 128, 8
        $region40: #{discriminator_forward.7} parent=27 // pred_fallthru
          _
      $region28: #{discriminator_forward.7} parent=5 // pred_fallthru
        _
      %p381 = scmp.le.s32.totalorder 2, %s15
      // Predicated region
      $region41: #{discriminator_forward.7} parent=5 // pred_check
        %p382 = pneg %p381
      $region42: #{discriminator_forward.7} parent=5 // pred_check_branch
        %384 = sbr.rel (%p382) target = $region44
      $region43: #{discriminator_forward.7} parent=5 // pred_region
        %s385 = ssub.s32 %s15, 2
        // Predicated region
        $region45: #{discriminator_forward.7} parent=43 // pred_check
          %p386 = pneg %p91
        $region46: #{discriminator_forward.7} parent=43 // pred_check_branch
          %388 = sbr.rel (%p386) target = $region48
        $region47: #{discriminator_forward.7} parent=43 // pred_region
          %s389 = sand.u32 %s76, 1
          %s390 = scalar_lea.sflag [#allocation4], %s389
          %s391 = sand.u32 %s76, 1
          %s392 = smul.addr %s391, 16
          %s393 = scalar_lea.vmem [#allocation7], %s392
          %394 = dma.done %s390, 256
        $region48: #{discriminator_forward.7} parent=43 // pred_fallthru
          _
      $region44: #{discriminator_forward.7} parent=5 // pred_fallthru
        _
    $region6: #{discriminator_forward.7} parent=1 // loop_footer
      %s19 = sadd.s32 1, %s15
    $region7: #{discriminator_forward.7} parent=1 // loop_footer_branch
      %14 = sbr.rel target = $region3
    $region8: #{discriminator_forward.7} parent=1 // loop_exit
      _
    %395 = vsyncpa [#allocation3], 1
    %s396 = scalar_lea.sflag [#allocation3], 1
    %397 = vsyncpa %s396, 1
    %398 = vsyncpa [#allocation6], 1
    %399 = vsyncpa [#allocation4], 1
    %s400 = scalar_lea.sflag [#allocation4], 1
    %401 = vsyncpa %s400, 1

// kernel: discriminator_forward.8
$region0: #{discriminator_forward.8}
  #allocation0 [shape = 'u32[]', space=smem, size = 0x4, offset = 0x4, fixed_abs, tag = 'smem constant byte address 0x4 - core index']
  #allocation1 [shape = 'u32[144,128]{1,0:T(1,128)}', space=vmem, size = 0x12000, scoped, tag = 'internal scratch']
  %s0 = inlined_call_operand.hbm [shape: f32[2,6,64], index: 0, kind: input, shape index: {}]
  %s1 = inlined_call_operand.hbm [shape: f32[2,64,16], index: 1, kind: input, shape index: {}]
  %s2 = inlined_call_operand.hbm [shape: f32[2,4,16], index: 2, kind: output, shape index: {}]
  %s3 = sld [smem:[#allocation0]]
  $region49: #{discriminator_forward.8} parent=0
    _
  %s5 = ssub.s32 1, %s3
  %s6 = scalar_select 0, %s5, %s3
  $region1: #{discriminator_forward.8} parent=0
    #allocation2 [shape = 'u8[8192]{0}', space=vmem, size = 0x2000, scoped, tag = 'input window, operand 0']
    #allocation3 [shape = 's32[2]{0}', space=sflag, size = 0x8, scoped, tag = 'scoped memory for discriminator_forward.8']
    #allocation4 [shape = 's32[2]{0}', space=sflag, size = 0x8, scoped, tag = 'scoped memory for discriminator_forward.8']
    #allocation5 [shape = 'u8[65536]{0}', space=vmem, size = 0x10000, scoped, tag = 'input window, operand 1, single buffered']
    #allocation6 [shape = 's32[1]{0}', space=sflag, size = 0x4, scoped, tag = 'scoped memory for discriminator_forward.8']
    #allocation7 [shape = 'u8[4096]{0}', space=vmem, size = 0x1000, scoped, tag = 'output window, operand 0']
    %7 = vsyncpa [#allocation3], 0
    %s8 = scalar_lea.sflag [#allocation3], 1
    %9 = vsyncpa %s8, 0
    %10 = vsyncpa [#allocation6], 0
    %11 = vsyncpa [#allocation4], 0
    %s12 = scalar_lea.sflag [#allocation4], 1
    %13 = vsyncpa %s12, 0
    loop: start=0, step=1, limit=4
    $region2: #{discriminator_forward.8} parent=1 // loop_pre_header
      _
    $region3: #{discriminator_forward.8} parent=1 // loop_header
      %s15 = sphi 0, %s19
      %p16 = scmp.ge.s32.totalorder %s15, 4
      %s25 = sphi 0, %s27
      %s28 = sphi 0, %s25
      %s29 = sphi 0, %s28
      %s45 = sphi 0, %s29
      %s49 = sphi 0, %s49
      %s51 = sphi 0, %s49
      %s52 = sphi 0, %s51
      %s66 = sphi 0, %s52
      %s72 = sphi 0, %s74
      %s75 = sphi 0, %s72
      %s76 = sphi 0, %s75
      %s92 = sphi 0, %s76
    $region4: #{discriminator_forward.8} parent=1 // loop_header_branch
      %18 = sbr.rel (%p16) target = $region8
    $region5: #{discriminator_forward.8} parent=1 // loop_body
      %s20 = ssub.s32 %s15, 1
      %s21 = ssub.s32 %s15, 2
      %s22 = sadd.s32 %s15, 1
      %s23 = ssub.s32 %s15, %s22
      %p24 = scmp.eq.s32.totalorder %s23, 0
      %s26 = sadd.s32 %s25, 1
      %s27 = scalar_select %p24, %s25, %s26
      %p30 = pneg %p24
      %p31 = scmp.eq.s32.totalorder %s15, 1
      %p32 = por %p30, %p31
      %p33 = scmp.ne.s32.totalorder %s25, %s28
      %p34 = scmp.eq.s32.totalorder %s15, 0
      %p35 = por %p33, %p34
      %p36 = scmp.ne.s32.totalorder %s25, %s28
      %p37 = scmp.eq.s32.totalorder %s20, 1
      %p38 = por %p36, %p37
      %p39 = scmp.ne.s32.totalorder %s28, %s29
      %p40 = scmp.eq.s32.totalorder %s20, 0
      %p41 = por %p39, %p40
      %p42 = scmp.ne.s32.totalorder %s28, %s29
      %p43 = scmp.eq.s32.totalorder %s21, 1
      %p44 = por %p42, %p43
      %p46 = scmp.ne.s32.totalorder %s29, %s45
      %p47 = scmp.eq.s32.totalorder %s21, 0
      %p48 = por %p46, %p47
      %s50 = sadd.s32 %s49, 1
      %p53 = scmp.eq.s32.totalorder %s15, 1
      %p54 = scmp.ne.s32.totalorder %s49, %s51
      %p55 = scmp.eq.s32.totalorder %s15, 0
      %p56 = por %p54, %p55
      %p57 = scmp.ne.s32.totalorder %s49, %s51
      %p58 = scmp.eq.s32.totalorder %s20, 1
      %p59 = por %p57, %p58
      %p60 = scmp.ne.s32.totalorder %s51, %s52
      %p61 = scmp.eq.s32.totalorder %s20, 0
      %p62 = por %p60, %p61
      %p63 = scmp.ne.s32.totalorder %s51, %s52
      %p64 = scmp.eq.s32.totalorder %s21, 1
      %p65 = por %p63, %p64
      %p67 = scmp.ne.s32.totalorder %s52, %s66
      %p68 = scmp.eq.s32.totalorder %s21, 0
      %p69 = por %p67, %p68
      %s70 = ssub.s32 %s15, %s22
      %p71 = scmp.eq.s32.totalorder %s70, 0
      %s73 = sadd.s32 %s72, 1
      %s74 = scalar_select %p71, %s72, %s73
      %p77 = pneg %p71
      %p78 = scmp.eq.s32.totalorder %s15, 1
      %p79 = por %p77, %p78
      %p80 = scmp.ne.s32.totalorder %s72, %s75
      %p81 = scmp.eq.s32.totalorder %s15, 0
      %p82 = por %p80, %p81
      %p83 = scmp.ne.s32.totalorder %s72, %s75
      %p84 = scmp.eq.s32.totalorder %s20, 1
      %p85 = por %p83, %p84
      %p86 = scmp.ne.s32.totalorder %s75, %s76
      %p87 = scmp.eq.s32.totalorder %s20, 0
      %p88 = por %p86, %p87
      %p89 = scmp.ne.s32.totalorder %s75, %s76
      %p90 = scmp.eq.s32.totalorder %s21, 1
      %p91 = por %p89, %p90
      %p93 = scmp.ne.s32.totalorder %s76, %s92
      %p94 = scmp.eq.s32.totalorder %s21, 0
      %p95 = por %p93, %p94
      %p96 = scmp.le.s32.totalorder 1, %s15
      %p97 = scmp.lt.s32.totalorder %s15, 3
      %p98 = pnand %p96, %p97
      %p99 = pneg %p98
      // Predicated region
      $region9: #{discriminator_forward.8} parent=5 // pred_check
        _
      $region10: #{discriminator_forward.8} parent=5 // pred_check_branch
        %101 = sbr.rel (%p98) target = $region12
      $region11: #{discriminator_forward.8} parent=5 // pred_region
        %s102 = ssub.s32 %s15, 1
        // Predicated region
        $region13: #{discriminator_forward.8} parent=11 // pred_check
          %p103 = pneg %p62
        $region14: #{discriminator_forward.8} parent=11 // pred_check_branch
          %105 = sbr.rel (%p103) target = $region16
        $region15: #{discriminator_forward.8} parent=11 // pred_region
          %s107 = ssub.s32 2048, 2048
          %108 = vsyncadd [#allocation6], %s107
          %s109 = sshll.u32 [#allocation5], 4
          %s110 = int_to_ptr.vmem [resolvable:$true] %s109
          %115 = dma.hbm_to_vmem [thread:$0]  %s1, 2048, %s110, [#allocation6], 128, 128, 8
        $region16: #{discriminator_forward.8} parent=11 // pred_fallthru
          _
      $region12: #{discriminator_forward.8} parent=5 // pred_fallthru
        _
      %p116 = scmp.lt.s32.totalorder %s15, 2
      // Predicated region
      $region17: #{discriminator_forward.8} parent=5 // pred_check
        %p117 = pneg %p116
      $region18: #{discriminator_forward.8} parent=5 // pred_check_branch
        %119 = sbr.rel (%p117) target = $region20
      $region19: #{discriminator_forward.8} parent=5 // pred_region
        // Predicated region
        $region21: #{discriminator_forward.8} parent=19 // pred_check
          %p120 = pneg %p35
        $region22: #{discriminator_forward.8} parent=19 // pred_check_branch
          %122 = sbr.rel (%p120) target = $region24
        $region23: #{discriminator_forward.8} parent=19 // pred_region
          %s123 = sand.u32 %s25, 1
          %s124 = scalar_lea.sflag [#allocation3], %s123
          %s125 = sand.u32 %s25, 1
          %s126 = smul.addr %s125, 8
          %s127 = scalar_lea.vmem [#allocation2], %s126
          %s129 = ssub.s32 128, 128
          %130 = vsyncadd %s124, %s129
          %s131 = smul.addr %s15, 128
          %s132 = scalar_lea.hbm %s0, %s131
          %s134 = sshll.u32 %s127, 4
          %s135 = int_to_ptr.vmem [resolvable:$true] %s134
          %137 = dma.hbm_to_vmem [thread:$0]  %s132, 128, %s135, %s124
        $region24: #{discriminator_forward.8} parent=19 // pred_fallthru
          _
      $region20: #{discriminator_forward.8} parent=5 // pred_fallthru
        _
      %p138 = scmp.le.s32.totalorder 1, %s15
      %p139 = scmp.lt.s32.totalorder %s15, 3
      %p140 = pnand %p138, %p139
      %p141 = pneg %p140
      // Predicated region
      $region25: #{discriminator_forward.8} parent=5 // pred_check
        _
      $region26: #{discriminator_forward.8} parent=5 // pred_check_branch
        %143 = sbr.rel (%p140) target = $region28
      $region27: #{discriminator_forward.8} parent=5 // pred_region
        %s144 = ssub.s32 %s15, 1
        %s145 = sand.u32 %s28, 1
        %s146 = scalar_lea.sflag [#allocation3], %s145
        %s147 = sand.u32 %s28, 1
        %s148 = smul.addr %s147, 8
        %s149 = scalar_lea.vmem [#allocation2], %s148
        // Predicated region
        $region29: #{discriminator_forward.8} parent=27 // pred_check
          %p150 = pneg %p41
        $region30: #{discriminator_forward.8} parent=27 // pred_check_branch
          %152 = sbr.rel (%p150) target = $region32
        $region31: #{discriminator_forward.8} parent=27 // pred_region
          %153 = dma.done %s146, 128
        $region32: #{discriminator_forward.8} parent=27 // pred_fallthru
          _
        // Predicated region
        $region33: #{discriminator_forward.8} parent=27 // pred_check
          %p154 = pneg %p62
        $region34: #{discriminator_forward.8} parent=27 // pred_check_branch
          %156 = sbr.rel (%p154) target = $region36
        $region35: #{discriminator_forward.8} parent=27 // pred_region
          %157 = dma.done [#allocation6], 2048
        $region36: #{discriminator_forward.8} parent=27 // pred_fallthru
          _
        %s158 = sand.u32 %s28, 1
        %s159 = scalar_lea.sflag [#allocation3], %s158
        %s160 = sand.u32 %s28, 1
        %s161 = smul.addr %s160, 8
        %s162 = scalar_lea.vmem [#allocation2], %s161
        %p163 = pneg %p41
        %p164 = pneg %p38
        %p165 = pneg %p62
        %p166 = pneg %p59
        %p167 = pneg %p88
        %p168 = pneg %p85
        %s169 = sand.u32 %s75, 1
        %s170 = scalar_lea.sflag [#allocation4], %s169
        %s171 = sand.u32 %s75, 1
        %s172 = smul.addr %s171, 4
        %s173 = scalar_lea.vmem [#allocation7], %s172
        %v174 = vld [vmem:[%s149] sm:$0xf]
        %v175 = vld [vmem:[%s149 + $0x2] sm:$0xf]
        %v176 = vld [vmem:[#allocation5] sm:$0xff]
        %v177 = vld [vmem:[#allocation5 + $0x8] sm:$0xff]
        %v178 = vld [vmem:[#allocation5 + $0x10] sm:$0xff]
        %v179 = vld [vmem:[#allocation5 + $0x18] sm:$0xff]
        %v180 = vld [vmem:[#allocation5 + $0x20] sm:$0xff]
        %v181 = vld [vmem:[#allocation5 + $0x28] sm:$0xff]
        %v182 = vld [vmem:[#allocation5 + $0x30] sm:$0xff]
        %v183 = vld [vmem:[#allocation5 + $0x38] sm:$0xff]
        %s184 = scalar_lea.vmem [#allocation5], 64
        %v185 = vld [vmem:[%s184] sm:$0xff]
        %v186 = vld [vmem:[%s184 + $0x8] sm:$0xff]
        %v187 = vld [vmem:[%s184 + $0x10] sm:$0xff]
        %v188 = vld [vmem:[%s184 + $0x18] sm:$0xff]
        %v189 = vld [vmem:[%s184 + $0x20] sm:$0xff]
        %v190 = vld [vmem:[%s184 + $0x28] sm:$0xff]
        %v191 = vld [vmem:[%s184 + $0x30] sm:$0xff]
        %v192 = vld [vmem:[%s184 + $0x38] sm:$0xff]
        %vm193 = vcmask 523264
        %v195 = vsel %vm193, %v175, 0
        %197 = vmatprep.subr.mxu0 0.0
        %198 = vmatpush1.msra.mxu0 %v185
        %199 = vmatprep.subr.mxu0 0.0
        %200 = vmatpush1.msra.mxu0 %v186
        %201 = vmatprep.subr.mxu0 0.0
        %202 = vmatpush1.msra.mxu0 %v187
        %203 = vmatprep.subr.mxu0 0.0
        %204 = vmatpush1.msra.mxu0 %v188
        %205 = vmatprep.subr.mxu0 0.0
        %206 = vmatpush1.msra.mxu0 %v189
        %207 = vmatprep.subr.mxu0 0.0
        %208 = vmatpush1.msra.mxu0 %v190
        %209 = vmatprep.subr.mxu0 0.0
        %210 = vmatpush1.msra.mxu0 %v191
        %211 = vmatprep.subr.mxu0 0.0
        %212 = vmatpush1.msra.mxu0 %v192
        %213 = vmatprep.subr.mxu0 0.0
        %214 = vmatpush1.msra.mxu0 0.0
        %215 = vmatprep.subr.mxu0 0.0
        %216 = vmatpush1.msra.mxu0 0.0
        %217 = vmatprep.subr.mxu0 0.0
        %218 = vmatpush1.msra.mxu0 0.0
        %219 = vmatprep.subr.mxu0 0.0
        %220 = vmatpush1.msra.mxu0 0.0
        %221 = vmatprep.subr.mxu0 0.0
        %222 = vmatpush1.msra.mxu0 0.0
        %223 = vmatprep.subr.mxu0 0.0
        %224 = vmatpush1.msra.mxu0 0.0
        %225 = vmatprep.subr.mxu0 0.0
        %226 = vmatpush1.msra.mxu0 0.0
        %227 = vmatprep.subr.mxu0 0.0
        %228 = vmatpush1.msra.mxu0 0.0
        %229 = vmatprep.subr.mxu0 0.0
        %230 = vmatpush1.msra.mxu0 0.0
        %231 = vmatprep.subr.mxu0 0.0
        %232 = vmatpush1.msra.mxu0 0.0
        %233 = vmatprep.subr.mxu0 0.0
        %234 = vmatpush1.msra.mxu0 0.0
        %235 = vmatprep.subr.mxu0 0.0
        %236 = vmatpush1.msra.mxu0 0.0
        %237 = vmatprep.subr.mxu0 0.0
        %238 = vmatpush1.msra.mxu0 0.0
        %239 = vmatprep.subr.mxu0 0.0
        %240 = vmatpush1.msra.mxu0 0.0
        %241 = vmatprep.subr.mxu0 0.0
        %242 = vmatpush1.msra.mxu0 0.0
        %243 = vmatprep.subr.mxu0 0.0
        %244 = vmatpush1.msra.mxu0 0.0
        %245 = vmatprep.subr.mxu0 0.0
        %246 = vmatpush1.msra.mxu0 0.0
        %247 = vmatprep.subr.mxu0 0.0
        %248 = vmatpush1.msra.mxu0 0.0
        %249 = vmatprep.subr.mxu0 0.0
        %250 = vmatpush1.msra.mxu0 0.0
        %251 = vmatprep.subr.mxu0 0.0
        %252 = vmatpush1.msra.mxu0 0.0
        %253 = vmatprep.subr.mxu0 0.0
        %254 = vmatpush1.msra.mxu0 0.0
        %255 = vmatprep.subr.mxu0 0.0
        %256 = vmatpush1.msra.mxu0 0.0
        %257 = vmatprep.subr.mxu0 0.0
        %258 = vmatpush1.msra.mxu0 0.0
        %259 = vmatprep.subr.mxu0 0.0
        %260 = vmatpush1.msra.mxu0 0.0
        %261 = vmatprep.mubr.f32.mxu0 0.0
        %262 = vmatmul.mubr.f32.gmra.mrb[0].mxu0 %v195
        %v263 = vpop.f32.mrb[0].mxu0
        %v264 = vadd.f32 0.0, %v263
        %v265 = vpop.f32.mrb[0].mxu0
        %266 = vdwg.mxu0
        %v268 = vsel %vm193, %v174, 0
        %270 = vmatprep.subr.mxu0 0.0
        %271 = vmatpush1.msra.mxu0 %v176
        %272 = vmatprep.subr.mxu0 0.0
        %273 = vmatpush1.msra.mxu0 %v177
        %274 = vmatprep.subr.mxu0 0.0
        %275 = vmatpush1.msra.mxu0 %v178
        %276 = vmatprep.subr.mxu0 0.0
        %277 = vmatpush1.msra.mxu0 %v179
        %278 = vmatprep.subr.mxu0 0.0
        %279 = vmatpush1.msra.mxu0 %v180
        %280 = vmatprep.subr.mxu0 0.0
        %281 = vmatpush1.msra.mxu0 %v181
        %282 = vmatprep.subr.mxu0 0.0
        %283 = vmatpush1.msra.mxu0 %v182
        %284 = vmatprep.subr.mxu0 0.0
        %285 = vmatpush1.msra.mxu0 %v183
        %286 = vmatprep.subr.mxu0 0.0
        %287 = vmatpush1.msra.mxu0 0.0
        %288 = vmatprep.subr.mxu0 0.0
        %289 = vmatpush1.msra.mxu0 0.0
        %290 = vmatprep.subr.mxu0 0.0
        %291 = vmatpush1.msra.mxu0 0.0
        %292 = vmatprep.subr.mxu0 0.0
        %293 = vmatpush1.msra.mxu0 0.0
        %294 = vmatprep.subr.mxu0 0.0
        %295 = vmatpush1.msra.mxu0 0.0
        %296 = vmatprep.subr.mxu0 0.0
        %297 = vmatpush1.msra.mxu0 0.0
        %298 = vmatprep.subr.mxu0 0.0
        %299 = vmatpush1.msra.mxu0 0.0
        %300 = vmatprep.subr.mxu0 0.0
        %301 = vmatpush1.msra.mxu0 0.0
        %302 = vmatprep.subr.mxu0 0.0
        %303 = vmatpush1.msra.mxu0 0.0
        %304 = vmatprep.subr.mxu0 0.0
        %305 = vmatpush1.msra.mxu0 0.0
        %306 = vmatprep.subr.mxu0 0.0
        %307 = vmatpush1.msra.mxu0 0.0
        %308 = vmatprep.subr.mxu0 0.0
        %309 = vmatpush1.msra.mxu0 0.0
        %310 = vmatprep.subr.mxu0 0.0
        %311 = vmatpush1.msra.mxu0 0.0
        %312 = vmatprep.subr.mxu0 0.0
        %313 = vmatpush1.msra.mxu0 0.0
        %314 = vmatprep.subr.mxu0 0.0
        %315 = vmatpush1.msra.mxu0 0.0
        %316 = vmatprep.subr.mxu0 0.0
        %317 = vmatpush1.msra.mxu0 0.0
        %318 = vmatprep.subr.mxu0 0.0
        %319 = vmatpush1.msra.mxu0 0.0
        %320 = vmatprep.subr.mxu0 0.0
        %321 = vmatpush1.msra.mxu0 0.0
        %322 = vmatprep.subr.mxu0 0.0
        %323 = vmatpush1.msra.mxu0 0.0
        %324 = vmatprep.subr.mxu0 0.0
        %325 = vmatpush1.msra.mxu0 0.0
        %326 = vmatprep.subr.mxu0 0.0
        %327 = vmatpush1.msra.mxu0 0.0
        %328 = vmatprep.subr.mxu0 0.0
        %329 = vmatpush1.msra.mxu0 0.0
        %330 = vmatprep.subr.mxu0 0.0
        %331 = vmatpush1.msra.mxu0 0.0
        %332 = vmatprep.subr.mxu0 0.0
        %333 = vmatpush1.msra.mxu0 0.0
        %334 = vmatprep.mubr.f32.mxu0 0.0
        %335 = vmatmul.mubr.f32.gmra.mrb[0].mxu0 %v268
        %v336 = vpop.f32.mrb[0].mxu0
        %v337 = vadd.f32 %v264, %v336
        %v338 = vpop.f32.mrb[0].mxu0
        %339 = vdwg.mxu0
        %vm340 = vcmp.ge.f32.partialorder %v337, 0.0
        %v341 = vmul.f32 %v337, 0.2
        %v342 = vsel %vm340, %v337, %v341
        %vm343 = vcmask 125952
        %344 = vst.msk [vmem:[%s173] sm:$0xf] %vm343, %v342
        %s345 = sand.u32 %s75, 1
        %s346 = scalar_lea.sflag [#allocation4], %s345
        %s347 = sand.u32 %s75, 1
        %s348 = smul.addr %s347, 4
        %s349 = scalar_lea.vmem [#allocation7], %s348
        // Predicated region
        $region37: #{discriminator_forward.8} parent=27 // pred_check
          %p350 = pneg %p85
        $region38: #{discriminator_forward.8} parent=27 // pred_check_branch
          %352 = sbr.rel (%p350) target = $region40
        $region39: #{discriminator_forward.8} parent=27 // pred_region
          %s354 = ssub.s32 64, 64
          %355 = vsyncadd %s346, %s354
          %s356 = smul.addr %s20, 64
          %s357 = scalar_lea.hbm %s2, %s356
          %s359 = sshll.u32 %s349, 4
          %s360 = int_to_ptr.vmem [resolvable:$true] %s359
          %362 = dma.vmem_to_hbm [thread:$0]  %s360, 64, %s357, %s346
        $region40: #{discriminator_forward.8} parent=27 // pred_fallthru
          _
      $region28: #{discriminator_forward.8} parent=5 // pred_fallthru
        _
      %p363 = scmp.le.s32.totalorder 2, %s15
      // Predicated region
      $region41: #{discriminator_forward.8} parent=5 // pred_check
        %p364 = pneg %p363
      $region42: #{discriminator_forward.8} parent=5 // pred_check_branch
        %366 = sbr.rel (%p364) target = $region44
      $region43: #{discriminator_forward.8} parent=5 // pred_region
        %s367 = ssub.s32 %s15, 2
        // Predicated region
        $region45: #{discriminator_forward.8} parent=43 // pred_check
          %p368 = pneg %p91
        $region46: #{discriminator_forward.8} parent=43 // pred_check_branch
          %370 = sbr.rel (%p368) target = $region48
        $region47: #{discriminator_forward.8} parent=43 // pred_region
          %s371 = sand.u32 %s76, 1
          %s372 = scalar_lea.sflag [#allocation4], %s371
          %s373 = sand.u32 %s76, 1
          %s374 = smul.addr %s373, 4
          %s375 = scalar_lea.vmem [#allocation7], %s374
          %376 = dma.done %s372, 64
        $region48: #{discriminator_forward.8} parent=43 // pred_fallthru
          _
      $region44: #{discriminator_forward.8} parent=5 // pred_fallthru
        _
    $region6: #{discriminator_forward.8} parent=1 // loop_footer
      %s19 = sadd.s32 1, %s15
    $region7: #{discriminator_forward.8} parent=1 // loop_footer_branch
      %14 = sbr.rel target = $region3
    $region8: #{discriminator_forward.8} parent=1 // loop_exit
      _
    %377 = vsyncpa [#allocation3], 1
    %s378 = scalar_lea.sflag [#allocation3], 1
    %379 = vsyncpa %s378, 1
    %380 = vsyncpa [#allocation6], 1
    %381 = vsyncpa [#allocation4], 1
    %s382 = scalar_lea.sflag [#allocation4], 1
    %383 = vsyncpa %s382, 1

// kernel: discriminator_forward.9
$region0: #{discriminator_forward.9}
  #allocation0 [shape = 'u32[]', space=smem, size = 0x4, offset = 0x4, fixed_abs, tag = 'smem constant byte address 0x4 - core index']
  #allocation1 [shape = 'u32[144,128]{1,0:T(1,128)}', space=vmem, size = 0x12000, scoped, tag = 'internal scratch']
  %s0 = inlined_call_operand.hbm [shape: f32[2,320], index: 0, kind: input, shape index: {}]
  %s1 = inlined_call_operand.hbm [shape: f32[320,6], index: 1, kind: input, shape index: {}]
  %s2 = inlined_call_operand.hbm [shape: f32[2,6], index: 2, kind: output, shape index: {}]
  %s3 = sld [smem:[#allocation0]]
  $region26: #{discriminator_forward.9} parent=0
    _
  %s5 = ssub.s32 1, %s3
  %s6 = scalar_select 0, %s5, %s3
  $region1: #{discriminator_forward.9} parent=0
    #allocation2 [shape = 'u8[3072]{0}', space=vmem, size = 0xc00, scoped, tag = 'input window, operand 0, single buffered']
    #allocation3 [shape = 's32[1]{0}', space=sflag, size = 0x4, scoped, tag = 'scoped memory for discriminator_forward.9']
    #allocation4 [shape = 's32[1]{0}', space=sflag, size = 0x4, scoped, tag = 'scoped memory for discriminator_forward.9']
    #allocation5 [shape = 'u8[163840]{0}', space=vmem, size = 0x28000, scoped, tag = 'input window, operand 1, single buffered']
    #allocation6 [shape = 's32[1]{0}', space=sflag, size = 0x4, scoped, tag = 'scoped memory for discriminator_forward.9']
    #allocation7 [shape = 'u8[1024]{0}', space=vmem, size = 0x400, scoped, tag = 'output window, operand 0, single buffered']
    %7 = vsyncpa [#allocation3], 0
    %8 = vsyncpa [#allocation6], 0
    %9 = vsyncpa [#allocation4], 0
    // Predicated region
    $region2: #{discriminator_forward.9} parent=1 // pred_check
      _
    $region3: #{discriminator_forward.9} parent=1 // pred_check_branch
      %11 = sbr.rel (0) target = $region5
    $region4: #{discriminator_forward.9} parent=1 // pred_region
      %s13 = ssub.s32 96, 96
      %14 = vsyncadd [#allocation3], %s13
      %s16 = sshll.u32 [#allocation2], 4
      %s17 = int_to_ptr.vmem [resolvable:$true] %s16
      %19 = dma.hbm_to_vmem [thread:$0]  %s0, 96, %s17, [#allocation3]
    $region5: #{discriminator_forward.9} parent=1 // pred_fallthru
      _
    // Predicated region
    $region6: #{discriminator_forward.9} parent=1 // pred_check
      _
    $region7: #{discriminator_forward.9} parent=1 // pred_check_branch
      %21 = sbr.rel (0) target = $region9
    $region8: #{discriminator_forward.9} parent=1 // pred_region
      %s23 = ssub.s32 5120, 5120
      %24 = vsyncadd [#allocation6], %s23
      %s25 = sshll.u32 [#allocation5], 4
      %s26 = int_to_ptr.vmem [resolvable:$true] %s25
      %31 = dma.hbm_to_vmem [thread:$0]  %s1, 5120, %s26, [#allocation6], 128, 128, 8
    $region9: #{discriminator_forward.9} parent=1 // pred_fallthru
      _
    // Predicated region
    $region10: #{discriminator_forward.9} parent=1 // pred_check
      _
    $region11: #{discriminator_forward.9} parent=1 // pred_check_branch
      %33 = sbr.rel (0) target = $region13
    $region12: #{discriminator_forward.9} parent=1 // pred_region
      %34 = dma.done [#allocation3], 96
    $region13: #{discriminator_forward.9} parent=1 // pred_fallthru
      _
    // Predicated region
    $region14: #{discriminator_forward.9} parent=1 // pred_check
      _
    $region15: #{discriminator_forward.9} parent=1 // pred_check_branch
      %36 = sbr.rel (0) target = $region17
    $region16: #{discriminator_forward.9} parent=1 // pred_region
      %37 = dma.done [#allocation6], 5120
    $region17: #{discriminator_forward.9} parent=1 // pred_fallthru
      _
    %v38 = vld [vmem:[#allocation2] sm:$0x3f]
    %v39 = vld [vmem:[#allocation5] sm:$0xff]
    %v40 = vld [vmem:[#allocation5 + $0x8] sm:$0xff]
    %v41 = vld [vmem:[#allocation5 + $0x10] sm:$0xff]
    %v42 = vld [vmem:[#allocation5 + $0x18] sm:$0xff]
    %v43 = vld [vmem:[#allocation5 + $0x20] sm:$0xff]
    %v44 = vld [vmem:[#allocation5 + $0x28] sm:$0xff]
    %v45 = vld [vmem:[#allocation5 + $0x30] sm:$0xff]
    %v46 = vld [vmem:[#allocation5 + $0x38] sm:$0xff]
    %v47 = vld [vmem:[#allocation5 + $0x40] sm:$0xff]
    %v48 = vld [vmem:[#allocation5 + $0x48] sm:$0xff]
    %v49 = vld [vmem:[#allocation5 + $0x50] sm:$0xff]
    %v50 = vld [vmem:[#allocation5 + $0x58] sm:$0xff]
    %v51 = vld [vmem:[#allocation5 + $0x60] sm:$0xff]
    %v52 = vld [vmem:[#allocation5 + $0x68] sm:$0xff]
    %v53 = vld [vmem:[#allocation5 + $0x70] sm:$0xff]
    %v54 = vld [vmem:[#allocation5 + $0x78] sm:$0xff]
    %v55 = vld [vmem:[#allocation5 + $0x80] sm:$0xff]
    %v56 = vld [vmem:[#allocation5 + $0x88] sm:$0xff]
    %v57 = vld [vmem:[#allocation5 + $0x90] sm:$0xff]
    %v58 = vld [vmem:[#allocation5 + $0x98] sm:$0xff]
    %v59 = vld [vmem:[#allocation5 + $0xa0] sm:$0xff]
    %v60 = vld [vmem:[#allocation5 + $0xa8] sm:$0xff]
    %v61 = vld [vmem:[#allocation5 + $0xb0] sm:$0xff]
    %v62 = vld [vmem:[#allocation5 + $0xb8] sm:$0xff]
    %v63 = vld [vmem:[#allocation5 + $0xc0] sm:$0xff]
    %v64 = vld [vmem:[#allocation5 + $0xc8] sm:$0xff]
    %v65 = vld [vmem:[#allocation5 + $0xd0] sm:$0xff]
    %v66 = vld [vmem:[#allocation5 + $0xd8] sm:$0xff]
    %v67 = vld [vmem:[#allocation5 + $0xe0] sm:$0xff]
    %v68 = vld [vmem:[#allocation5 + $0xe8] sm:$0xff]
    %v69 = vld [vmem:[#allocation5 + $0xf0] sm:$0xff]
    %v70 = vld [vmem:[#allocation5 + $0xf8] sm:$0xff]
    %v71 = vld [vmem:[#allocation5 + $0x100] sm:$0xff]
    %v72 = vld [vmem:[#allocation5 + $0x108] sm:$0xff]
    %v73 = vld [vmem:[#allocation5 + $0x110] sm:$0xff]
    %v74 = vld [vmem:[#allocation5 + $0x118] sm:$0xff]
    %v75 = vld [vmem:[#allocation5 + $0x120] sm:$0xff]
    %v76 = vld [vmem:[#allocation5 + $0x128] sm:$0xff]
    %v77 = vld [vmem:[#allocation5 + $0x130] sm:$0xff]
    %v78 = vld [vmem:[#allocation5 + $0x138] sm:$0xff]
    %v80 = vcombine.high %v38, %v38
    %v82 = vunpack.c.l.s4 1983009808
    %v83 = vunpack.c.0.s8 %v82
    %v84 = vlaneseq
    %v85 = vshrl.u32 %v84, 7
    %v86 = vsub.s32 %v83, %v85
    %v87 = vrot.slane %v38, %v86
    %v89 = vunpack.c.l.s4 1983009808
    %v90 = vunpack.c.0.s8 %v89
    %v91 = vlaneseq
    %v92 = vshrl.u32 %v91, 7
    %v93 = vsub.s32 %v90, %v92
    %v94 = vrot.slane %v80, %v93
    %v95 = vcombine.high %v87, %v87
    %vm98 = vcmask 523264
    %v99 = vsel %vm98, %v94, 0
    %101 = vmatprep.subr.mxu0 0.0
    %102 = vmatpush1.msra.mxu0 %v39
    %103 = vmatprep.subr.mxu0 0.0
    %104 = vmatpush1.msra.mxu0 %v40
    %105 = vmatprep.subr.mxu0 0.0
    %106 = vmatpush1.msra.mxu0 %v41
    %107 = vmatprep.subr.mxu0 0.0
    %108 = vmatpush1.msra.mxu0 %v42
    %109 = vmatprep.subr.mxu0 0.0
    %110 = vmatpush1.msra.mxu0 %v43
    %111 = vmatprep.subr.mxu0 0.0
    %112 = vmatpush1.msra.mxu0 %v44
    %113 = vmatprep.subr.mxu0 0.0
    %114 = vmatpush1.msra.mxu0 %v45
    %115 = vmatprep.subr.mxu0 0.0
    %116 = vmatpush1.msra.mxu0 %v46
    %117 = vmatprep.subr.mxu0 0.0
    %118 = vmatpush1.msra.mxu0 %v47
    %119 = vmatprep.subr.mxu0 0.0
    %120 = vmatpush1.msra.mxu0 %v48
    %121 = vmatprep.subr.mxu0 0.0
    %122 = vmatpush1.msra.mxu0 %v49
    %123 = vmatprep.subr.mxu0 0.0
    %124 = vmatpush1.msra.mxu0 %v50
    %125 = vmatprep.subr.mxu0 0.0
    %126 = vmatpush1.msra.mxu0 %v51
    %127 = vmatprep.subr.mxu0 0.0
    %128 = vmatpush1.msra.mxu0 %v52
    %129 = vmatprep.subr.mxu0 0.0
    %130 = vmatpush1.msra.mxu0 %v53
    %131 = vmatprep.subr.mxu0 0.0
    %132 = vmatpush1.msra.mxu0 %v54
    %133 = vmatprep.subr.mxu0 0.0
    %134 = vmatpush1.msra.mxu0 %v55
    %135 = vmatprep.subr.mxu0 0.0
    %136 = vmatpush1.msra.mxu0 %v56
    %137 = vmatprep.subr.mxu0 0.0
    %138 = vmatpush1.msra.mxu0 %v57
    %139 = vmatprep.subr.mxu0 0.0
    %140 = vmatpush1.msra.mxu0 %v58
    %141 = vmatprep.subr.mxu0 0.0
    %142 = vmatpush1.msra.mxu0 %v59
    %143 = vmatprep.subr.mxu0 0.0
    %144 = vmatpush1.msra.mxu0 %v60
    %145 = vmatprep.subr.mxu0 0.0
    %146 = vmatpush1.msra.mxu0 %v61
    %147 = vmatprep.subr.mxu0 0.0
    %148 = vmatpush1.msra.mxu0 %v62
    %149 = vmatprep.subr.mxu0 0.0
    %150 = vmatpush1.msra.mxu0 %v63
    %151 = vmatprep.subr.mxu0 0.0
    %152 = vmatpush1.msra.mxu0 %v64
    %153 = vmatprep.subr.mxu0 0.0
    %154 = vmatpush1.msra.mxu0 %v65
    %155 = vmatprep.subr.mxu0 0.0
    %156 = vmatpush1.msra.mxu0 %v66
    %157 = vmatprep.subr.mxu0 0.0
    %158 = vmatpush1.msra.mxu0 %v67
    %159 = vmatprep.subr.mxu0 0.0
    %160 = vmatpush1.msra.mxu0 %v68
    %161 = vmatprep.subr.mxu0 0.0
    %162 = vmatpush1.msra.mxu0 %v69
    %163 = vmatprep.subr.mxu0 0.0
    %164 = vmatpush1.msra.mxu0 %v70
    %165 = vmatprep.mubr.f32.mxu0 %v95
    %166 = vmatmul.mubr.f32.gmra.mrb[0].mxu0 %v87
    %v167 = vpop.f32.mrb[0].mxu0
    %v168 = vadd.f32 0.0, %v167
    %v169 = vpop.f32.mrb[0].mxu0
    %170 = vdwg.mxu0
    %171 = vmatprep.subr.mxu0 0.0
    %172 = vmatpush1.msra.mxu0 %v71
    %173 = vmatprep.subr.mxu0 0.0
    %174 = vmatpush1.msra.mxu0 %v72
    %175 = vmatprep.subr.mxu0 0.0
    %176 = vmatpush1.msra.mxu0 %v73
    %177 = vmatprep.subr.mxu0 0.0
    %178 = vmatpush1.msra.mxu0 %v74
    %179 = vmatprep.subr.mxu0 0.0
    %180 = vmatpush1.msra.mxu0 %v75
    %181 = vmatprep.subr.mxu0 0.0
    %182 = vmatpush1.msra.mxu0 %v76
    %183 = vmatprep.subr.mxu0 0.0
    %184 = vmatpush1.msra.mxu0 %v77
    %185 = vmatprep.subr.mxu0 0.0
    %186 = vmatpush1.msra.mxu0 %v78
    %187 = vmatprep.subr.mxu0 0.0
    %188 = vmatpush1.msra.mxu0 0.0
    %189 = vmatprep.subr.mxu0 0.0
    %190 = vmatpush1.msra.mxu0 0.0
    %191 = vmatprep.subr.mxu0 0.0
    %192 = vmatpush1.msra.mxu0 0.0
    %193 = vmatprep.subr.mxu0 0.0
    %194 = vmatpush1.msra.mxu0 0.0
    %195 = vmatprep.subr.mxu0 0.0
    %196 = vmatpush1.msra.mxu0 0.0
    %197 = vmatprep.subr.mxu0 0.0
    %198 = vmatpush1.msra.mxu0 0.0
    %199 = vmatprep.subr.mxu0 0.0
    %200 = vmatpush1.msra.mxu0 0.0
    %201 = vmatprep.subr.mxu0 0.0
    %202 = vmatpush1.msra.mxu0 0.0
    %203 = vmatprep.subr.mxu0 0.0
    %204 = vmatpush1.msra.mxu0 0.0
    %205 = vmatprep.subr.mxu0 0.0
    %206 = vmatpush1.msra.mxu0 0.0
    %207 = vmatprep.subr.mxu0 0.0
    %208 = vmatpush1.msra.mxu0 0.0
    %209 = vmatprep.subr.mxu0 0.0
    %210 = vmatpush1.msra.mxu0 0.0
    %211 = vmatprep.subr.mxu0 0.0
    %212 = vmatpush1.msra.mxu0 0.0
    %213 = vmatprep.subr.mxu0 0.0
    %214 = vmatpush1.msra.mxu0 0.0
    %215 = vmatprep.subr.mxu0 0.0
    %216 = vmatpush1.msra.mxu0 0.0
    %217 = vmatprep.subr.mxu0 0.0
    %218 = vmatpush1.msra.mxu0 0.0
    %219 = vmatprep.subr.mxu0 0.0
    %220 = vmatpush1.msra.mxu0 0.0
    %221 = vmatprep.subr.mxu0 0.0
    %222 = vmatpush1.msra.mxu0 0.0
    %223 = vmatprep.subr.mxu0 0.0
    %224 = vmatpush1.msra.mxu0 0.0
    %225 = vmatprep.subr.mxu0 0.0
    %226 = vmatpush1.msra.mxu0 0.0
    %227 = vmatprep.subr.mxu0 0.0
    %228 = vmatpush1.msra.mxu0 0.0
    %229 = vmatprep.subr.mxu0 0.0
    %230 = vmatpush1.msra.mxu0 0.0
    %231 = vmatprep.subr.mxu0 0.0
    %232 = vmatpush1.msra.mxu0 0.0
    %233 = vmatprep.subr.mxu0 0.0
    %234 = vmatpush1.msra.mxu0 0.0
    %235 = vmatprep.mubr.f32.mxu0 0.0
    %236 = vmatmul.mubr.f32.gmra.mrb[0].mxu0 %v99
    %v237 = vpop.f32.mrb[0].mxu0
    %v238 = vadd.f32 %v168, %v237
    %v239 = vpop.f32.mrb[0].mxu0
    %240 = vdwg.mxu0
    %vm241 = vcmask 41984
    %242 = vst.msk [vmem:[#allocation7] sm:$0x3] %vm241, %v238
    // Predicated region
    $region18: #{discriminator_forward.9} parent=1 // pred_check
      _
    $region19: #{discriminator_forward.9} parent=1 // pred_check_branch
      %244 = sbr.rel (0) target = $region21
    $region20: #{discriminator_forward.9} parent=1 // pred_region
      %s246 = ssub.s32 32, 32
      %247 = vsyncadd [#allocation4], %s246
      %s249 = sshll.u32 [#allocation7], 4
      %s250 = int_to_ptr.vmem [resolvable:$true] %s249
      %252 = dma.vmem_to_hbm [thread:$0]  %s250, 32, %s2, [#allocation4]
    $region21: #{discriminator_forward.9} parent=1 // pred_fallthru
      _
    // Predicated region
    $region22: #{discriminator_forward.9} parent=1 // pred_check
      _
    $region23: #{discriminator_forward.9} parent=1 // pred_check_branch
      %254 = sbr.rel (0) target = $region25
    $region24: #{discriminator_forward.9} parent=1 // pred_region
      %255 = dma.done [#allocation4], 32
    $region25: #{discriminator_forward.9} parent=1 // pred_fallthru
      _
    %256 = vsyncpa [#allocation3], 1
    %257 = vsyncpa [#allocation6], 1
    %258 = vsyncpa [#allocation4], 1

</llo_original>
